<compile_context>
chip_gen: v7x
topology: tpu7x:2x2x1
jax: 0.10.0
libtpu: 0.0.40
codegen_flags: <defaults>
</compile_context>

<pallas_src>
import functools

import jax
import jax.numpy as jnp
from jax import lax
from jax.experimental import pallas as pl
from jax.experimental.pallas import tpu as pltpu

EPS = 1e-5
MLP_CHANNELS = (3, 64, 64, 256)
EMBED_DIMS = 256

# Packed-parameter row offsets (see pack_params()).
#   f32 blob (32, 256):
_PW1_ROW, _VW1_ROW = 0, 3
_PVEC_ROW, _VVEC_ROW, _FVEC_ROW = 6, 15, 24
#   bf16 blob (768, 256):
_PW2_ROW, _PW3_ROW = 0, 64
_VW2_ROW, _VW3_ROW = 128, 192
_FW_ROW = 256


def _round_up(x, m):
    return (x + m - 1) // m * m


# ----------------------------------------------------------------------------
# In-kernel helpers
# ----------------------------------------------------------------------------
def _ln_relu(y, wf_ref, row, width):
    """bias-add -> LayerNorm (biased var, eps=1e-5, one-pass stats) -> ReLU."""
    b = wf_ref[row + 0:row + 1, :width]
    g = wf_ref[row + 1:row + 2, :width]
    beta = wf_ref[row + 2:row + 3, :width]
    y = y + b
    mu = jnp.mean(y, axis=-1, keepdims=True)
    ms = jnp.mean(y * y, axis=-1, keepdims=True)
    var = jnp.maximum(ms - mu * mu, 0.0)
    y = (y - mu) * lax.rsqrt(var + EPS)
    return jnp.maximum(y * g + beta, 0.0)


def _mlp3(x, wf_ref, wb_ref, *, w1_row, w2_row, w3_row, vec_row):
    """3-layer Linear+LN+ReLU MLP with channels (3, 64, 64, 256)."""
    # Layer 1: K=3 on the (otherwise idle) MXU, f32 operands + accumulation.
    w1 = wf_ref[w1_row:w1_row + 3, 0:64]
    y = jnp.dot(x, w1, preferred_element_type=jnp.float32)
    y = _ln_relu(y, wf_ref, vec_row, 64)
    # Layer 2: 64 -> 64 on the MXU, bf16 operands, f32 accumulation.
    y = jnp.dot(y.astype(jnp.bfloat16), wb_ref[w2_row:w2_row + 64, 0:64],
                preferred_element_type=jnp.float32)
    y = _ln_relu(y, wf_ref, vec_row + 3, 64)
    # Layer 3: 64 -> 256 on the MXU.
    y = jnp.dot(y.astype(jnp.bfloat16), wb_ref[w3_row:w3_row + 64, 0:256],
                preferred_element_type=jnp.float32)
    return _ln_relu(y, wf_ref, vec_row + 6, EMBED_DIMS)


def motion_extractor_kernel(tile_n, corners_ref, motion_ref, wf_ref, wb_ref,
                            out_ref):
    E = EMBED_DIMS

    # ---- pointnet on corner-major normalized corners: (8, tile_n, 3) ----
    x = corners_ref[...].reshape(8 * tile_n, 3)        # tile-aligned merge
    x = _mlp3(x, wf_ref, wb_ref,
              w1_row=_PW1_ROW, w2_row=_PW2_ROW, w3_row=_PW3_ROW,
              vec_row=_PVEC_ROW)                       # (8*tile_n, 256)
    x8 = x.reshape(8, tile_n, E)                       # tile-aligned split
    # 8-way max as a balanced tree (depth 3 instead of 7).
    m01 = jnp.maximum(x8[0], x8[1])
    m23 = jnp.maximum(x8[2], x8[3])
    m45 = jnp.maximum(x8[4], x8[5])
    m67 = jnp.maximum(x8[6], x8[7])
    point_feat = jnp.maximum(jnp.maximum(m01, m23), jnp.maximum(m45, m67))

    # ---- velonet on (rot, vx, vy): (tile_n, 3) ----
    motion_feat = _mlp3(motion_ref[...], wf_ref, wb_ref,
                        w1_row=_VW1_ROW, w2_row=_VW2_ROW, w3_row=_VW3_ROW,
                        vec_row=_VVEC_ROW)

    # ---- fusion: cat([point_feat, motion_feat]) @ Wf == split matmul ----
    y = (jnp.dot(point_feat.astype(jnp.bfloat16),
                 wb_ref[_FW_ROW:_FW_ROW + E, :],
                 preferred_element_type=jnp.float32)
         + jnp.dot(motion_feat.astype(jnp.bfloat16),
                   wb_ref[_FW_ROW + E:_FW_ROW + 2 * E, :],
                   preferred_element_type=jnp.float32))
    out_ref[...] = _ln_relu(y, wf_ref, _FVEC_ROW, E)


# ----------------------------------------------------------------------------
# Plain-JAX glue: bbox decoding + corner generation (tiny elementwise work)
# ----------------------------------------------------------------------------
def denormalize_bbox(nb):
    rot = jnp.arctan2(nb[:, 6:7], nb[:, 7:8])
    cx, cy, cz = nb[:, 0:1], nb[:, 1:2], nb[:, 4:5]
    w, l, h = jnp.exp(nb[:, 2:3]), jnp.exp(nb[:, 3:4]), jnp.exp(nb[:, 5:6])
    vx, vy = nb[:, 8:9], nb[:, 9:10]
    return jnp.concatenate([cx, cy, cz, w, l, h, rot, vx, vy], axis=-1)


def _corner_table():
    # mmdet3d LiDARInstance3DBoxes corner order, relative origin (0.5, 0.5, 0).
    cn = jnp.array(
        [[0, 0, 0], [0, 0, 1], [0, 1, 1], [0, 1, 0],
         [1, 1, 0], [1, 1, 1], [1, 0, 1], [1, 0, 0]], dtype=jnp.float32)
    return cn - jnp.array([0.5, 0.5, 0.0], dtype=jnp.float32)


def normalized_corners_corner_major(decoded):
    """(corners - gravity_center) laid out corner-major: (8, N, 3)."""
    cn = _corner_table()                                   # (8, 3)
    dims = decoded[:, 3:6]                                 # (N, 3)
    corners = cn[:, None, :] * dims[None, :, :]            # (8, N, 3)
    yaw = decoded[:, 6]
    c, s = jnp.cos(yaw)[None, :], jnp.sin(yaw)[None, :]
    x, y, z = corners[..., 0], corners[..., 1], corners[..., 2]
    xr = x * c - y * s
    yr = x * s + y * c
    corners = jnp.stack([xr, yr, z], axis=-1)              # (8, N, 3)
    corners = corners + decoded[None, :, 0:3]              # translate to center
    gc = jnp.concatenate(
        [decoded[:, 0:2], decoded[:, 2:3] + 0.5 * decoded[:, 5:6]], axis=-1)
    return corners - gc[None, :, :]


def normalized_corners_from_boxes(decoded):
    """N-major (N, 8, 3) version, used only by the pure-JAX reference."""
    return jnp.transpose(normalized_corners_corner_major(decoded), (1, 0, 2))


# ----------------------------------------------------------------------------
# Parameter init (deterministic, synthetic) + packing for the kernel
# ----------------------------------------------------------------------------
def _init_mlp(key, channels):
    params = []
    for i in range(len(channels) - 1):
        key, kw, kb = jax.random.split(key, 3)
        cin, cout = channels[i], channels[i + 1]
        w = jax.random.normal(kw, (cin, cout), jnp.float32) * 0.05
        b = jax.random.normal(kb, (1, cout), jnp.float32) * 0.05
        g = jnp.ones((1, cout), jnp.float32)      # LayerNorm weight
        beta = jnp.zeros((1, cout), jnp.float32)  # LayerNorm bias
        params += [w, b, g, beta]
    return params


def init_params(key):
    k1, k2, k3 = jax.random.split(key, 3)
    return {
        "pointnet": _init_mlp(k1, MLP_CHANNELS),
        "velonet": _init_mlp(k2, MLP_CHANNELS),
        "fusion": _init_mlp(k3, (EMBED_DIMS * 2, EMBED_DIMS)),
    }


def pack_params(params):
    """-> (wf32 (32,256) f32, wb16 (768,256) bf16) packed parameter blobs."""
    def pad_cols(a):
        return jnp.pad(a, ((0, 0), (0, EMBED_DIMS - a.shape[1])))

    pn, vn, fn = params["pointnet"], params["velonet"], params["fusion"]
    # f32 blob: [p_w1(3); v_w1(3); p b/g/beta(9); v b/g/beta(9); f b/g/beta(3)]
    rows = [pad_cols(pn[0]), pad_cols(vn[0])]
    for ps in (pn, vn, fn):
        for l in range(len(ps) // 4):
            _, b, g, beta = ps[4 * l:4 * l + 4]
            rows += [pad_cols(b), pad_cols(g), pad_cols(beta)]
    wf32 = jnp.concatenate(rows, axis=0)                       # (27, 256)
    wf32 = jnp.pad(wf32, ((0, 32 - wf32.shape[0]), (0, 0)))    # (32, 256)
    # bf16 blob: [p_w2(64); p_w3(64); v_w2(64); v_w3(64); f_w(512)]
    wb16 = jnp.concatenate(
        [pad_cols(pn[4]), pn[8], pad_cols(vn[4]), vn[8], fn[0]],
        axis=0).astype(jnp.bfloat16)                           # (768, 256)
    return wf32, wb16


# ----------------------------------------------------------------------------
# Wrapper: pallas_call
# ----------------------------------------------------------------------------
def _tensorcores_per_chip():
    """2 for chips whose grid axes shard across two TensorCores, else 1."""
    try:
        kind = jax.devices()[0].device_kind.lower()
    except Exception:
        return 1
    if any(tok in kind for tok in ("v7", "7x", "v4", "v5p")):
        return 2
    return 1


def _choose_tile_n(n, two_tc):
    n8 = _round_up(max(n, 1), 8)
    if not two_tc:
        # Single TensorCore (v5e / v6e): a grid split is a purely serial loop;
        # keep one tile up to 512 rows.
        return min(n8, 512)
    # Two TensorCores (v7x / megacore): single tile for small N, otherwise
    # exactly two equal tiles (capped at 512 rows/tile for the lane-padded
    # corners block + pointnet intermediates under 64 MiB VMEM).
    if n8 <= 128:
        return n8
    return min(512, _round_up((n8 + 1) // 2, 8))


def motion_extractor_forward(cache_bboxes, params, *, tile_n=None):
    N = cache_bboxes.shape[0]
    two_tc = _tensorcores_per_chip() >= 2
    if tile_n is None:
        tile_n = _choose_tile_n(N, two_tc)
    tile_n = _round_up(tile_n, 8)
    Np = _round_up(N, tile_n)

    decoded = denormalize_bbox(cache_bboxes)
    corners = normalized_corners_corner_major(decoded)     # (8, N, 3)
    motion = decoded[:, 6:9]                               # (N, 3): rot, vx, vy
    if Np != N:
        corners = jnp.pad(corners, ((0, 0), (0, Np - N), (0, 0)))
        motion = jnp.pad(motion, ((0, Np - N), (0, 0)))

    wf32, wb16 = pack_params(params)

    in_specs = [
        pl.BlockSpec((8, tile_n, 3), lambda i: (0, i, 0)),  # corners
        pl.BlockSpec((tile_n, 3), lambda i: (i, 0)),        # motion
        pl.BlockSpec(wf32.shape, lambda i: (0, 0)),         # f32 param blob
        pl.BlockSpec(wb16.shape, lambda i: (0, 0)),         # bf16 weight blob
    ]
    out_spec = pl.BlockSpec((tile_n, EMBED_DIMS), lambda i: (i, 0))

    # Advisory cost estimate so XLA can overlap this small call.
    macs = 3 * 64 + 64 * 64 + 64 * 256
    flops = 2 * Np * (8 * macs + macs + 2 * EMBED_DIMS * EMBED_DIMS)
    transcendentals = Np * (8 * 3 + 3 + 1)                  # one rsqrt per LN row
    bytes_accessed = (int(wf32.size) * 4 + int(wb16.size) * 2
                      + int(corners.size) * 4 + int(motion.size) * 4
                      + Np * EMBED_DIMS * 4)

    # Explicit scoped-VMEM budget: 2-TC chips (v7x) have 64 MiB physical per
    # core, 1-TC chips (v5e/v6e) have 128 MiB; defaults (16/32 MiB) are too
    # small once tile_n grows.
    vmem_limit = (48 if two_tc else 96) * 1024 * 1024

    out = pl.pallas_call(
        functools.partial(motion_extractor_kernel, tile_n),
        out_shape=jax.ShapeDtypeStruct((Np, EMBED_DIMS), jnp.float32),
        grid_spec=pltpu.PrefetchScalarGridSpec(
            num_scalar_prefetch=0,
            grid=(Np // tile_n,),
            in_specs=in_specs,
            out_specs=out_spec,
        ),
        compiler_params=pltpu.CompilerParams(
            dimension_semantics=("parallel",),
            vmem_limit_bytes=vmem_limit),
        cost_estimate=pl.CostEstimate(
            flops=flops,
            transcendentals=transcendentals,
            bytes_accessed=bytes_accessed),
    )(corners, motion, wf32, wb16)
    return out[:N]


# ----------------------------------------------------------------------------
# Pure-JAX f32 reference (for a sanity check)
# ----------------------------------------------------------------------------
def _ref_mlp(x, ps):
    for i in range(0, len(ps), 4):
        w, b, g, beta = ps[i:i + 4]
        y = x @ w + b
        mu = y.mean(-1, keepdims=True)
        var = ((y - mu) ** 2).mean(-1, keepdims=True)
        y = (y - mu) / jnp.sqrt(var + EPS) * g + beta
        x = jnp.maximum(y, 0.0)
    return x


def reference_forward(cache_bboxes, params):
    decoded = denormalize_bbox(cache_bboxes)
    nc = normalized_corners_from_boxes(decoded)             # (N, 8, 3)
    pf = _ref_mlp(nc.reshape(-1, 3), params["pointnet"])
    pf = pf.reshape(nc.shape[0], 8, -1).max(axis=1)
    mf = _ref_mlp(decoded[:, 6:9], params["velonet"])
    return _ref_mlp(jnp.concatenate([pf, mf], axis=-1), params["fusion"])


if __name__ == "__main__":
    key = jax.random.PRNGKey(0)
    k_box, k_par = jax.random.split(key)
    params = init_params(k_par)

    # (N, forced tile_n or None).  Covers: exact single tile, padded single
    # tile (ragged N), and a forced multi-step grid (exercises the grid loop).
    cases = [(16, None), (19, None), (40, 16)]
    for N, forced_tile in cases:
        kb = jax.random.fold_in(k_box, N)
        cache_bboxes = jax.random.normal(kb, (N, 10), dtype=jnp.float32) * 0.5

        out = motion_extractor_forward(cache_bboxes, params,
                                       tile_n=forced_tile)
        out = jax.block_until_ready(out)

        ref = reference_forward(cache_bboxes, params)
        assert out.shape == (N, EMBED_DIMS)
        # bf16 MXU operands with f32 accumulation -> tolerance relaxed vs the
        # pure-f32 reference (LayerNorm statistics are still done in f32).
        assert jnp.allclose(out, ref, atol=5e-2, rtol=5e-2), (
            f"mismatch vs reference at N={N}: "
            f"max abs err {float(jnp.max(jnp.abs(out - ref)))}")

    print("KERNEL_OK")
</pallas_src>

<mosaic_0001>
module attributes {stable_mosaic.version = 11 : i64} {
  func.func @motion_extractor_kernel(%arg0: i32, %arg1: memref<8x16x3xf32, #tpu.memory_space<vmem>>, %arg2: memref<16x3xf32, #tpu.memory_space<vmem>>, %arg3: memref<32x256xf32, #tpu.memory_space<vmem>>, %arg4: memref<768x256xbf16, #tpu.memory_space<vmem>>, %arg5: memref<16x256xf32, #tpu.memory_space<vmem>>) attributes {dimension_semantics = [#tpu.dimension_semantics<parallel>], iteration_bounds = array<i64: 1>, scalar_prefetch = 0 : i64, scratch_operands = 0 : i64, tpu.core_type = #tpu.core_type<tc>, window_params = [{transform_indices = @transform_0, window_bounds = array<i64: 8, 16, 3>}, {transform_indices = @transform_1, window_bounds = array<i64: 16, 3>}, {pipeline_mode = #tpu.pipeline_mode<synchronous>, transform_indices = @transform_2, window_bounds = array<i64: 32, 256>}, {pipeline_mode = #tpu.pipeline_mode<synchronous>, transform_indices = @transform_3, window_bounds = array<i64: 768, 256>}, {transform_indices = @transform_4, window_bounds = array<i64: 16, 256>}]} {
    %c0 = arith.constant 0 : index
    %c0_0 = arith.constant 0 : index
    %c0_1 = arith.constant 0 : index
    %0 = vector.load %arg1[%c0, %c0_0, %c0_1] : memref<8x16x3xf32, #tpu.memory_space<vmem>>, vector<8x16x3xf32>
    %1 = vector.shape_cast %0 : vector<8x16x3xf32> to vector<128x3xf32>
    %c0_2 = arith.constant 0 : index
    %c0_3 = arith.constant 0 : index
    %2 = vector.load %arg3[%c0_2, %c0_3] : memref<32x256xf32, #tpu.memory_space<vmem>>, vector<3x64xf32>
    %cst = arith.constant dense<0.000000e+00> : vector<128x64xf32>
    %3 = tpu.matmul %1, %2, %cst {dimension_numbers = #tpu.dot_dimension_numbers<[1], [0], [0], [1], [0, 0, 1, 1], [], []>} : vector<128x3xf32>, vector<3x64xf32>, vector<128x64xf32> -> vector<128x64xf32>
    %c6 = arith.constant 6 : index
    %c0_4 = arith.constant 0 : index
    %4 = vector.load %arg3[%c6, %c0_4] : memref<32x256xf32, #tpu.memory_space<vmem>>, vector<1x64xf32>
    %c7 = arith.constant 7 : index
    %c0_5 = arith.constant 0 : index
    %5 = vector.load %arg3[%c7, %c0_5] : memref<32x256xf32, #tpu.memory_space<vmem>>, vector<1x64xf32>
    %c8 = arith.constant 8 : index
    %c0_6 = arith.constant 0 : index
    %6 = vector.load %arg3[%c8, %c0_6] : memref<32x256xf32, #tpu.memory_space<vmem>>, vector<1x64xf32>
    %7 = vector.broadcast %4 : vector<1x64xf32> to vector<128x64xf32>
    %8 = arith.addf %3, %7 : vector<128x64xf32>
    %cst_7 = arith.constant dense<0.000000e+00> : vector<128xf32>
    %9 = vector.multi_reduction <add>, %8, %cst_7 [1] : vector<128x64xf32> to vector<128xf32>
    %10 = vector.shape_cast %9 : vector<128xf32> to vector<128x1xf32>
    %cst_8 = arith.constant 6.400000e+01 : f32
    %11 = vector.broadcast %cst_8 : f32 to vector<128x1xf32>
    %12 = arith.divf %10, %11 : vector<128x1xf32>
    %13 = arith.mulf %8, %8 : vector<128x64xf32>
    %cst_9 = arith.constant dense<0.000000e+00> : vector<128xf32>
    %14 = vector.multi_reduction <add>, %13, %cst_9 [1] : vector<128x64xf32> to vector<128xf32>
    %15 = vector.shape_cast %14 : vector<128xf32> to vector<128x1xf32>
    %cst_10 = arith.constant 6.400000e+01 : f32
    %16 = vector.broadcast %cst_10 : f32 to vector<128x1xf32>
    %17 = arith.divf %15, %16 : vector<128x1xf32>
    %18 = arith.mulf %12, %12 : vector<128x1xf32>
    %19 = arith.subf %17, %18 : vector<128x1xf32>
    %cst_11 = arith.constant 0.000000e+00 : f32
    %20 = vector.broadcast %cst_11 : f32 to vector<128x1xf32>
    %21 = arith.maximumf %19, %20 : vector<128x1xf32>
    %22 = vector.broadcast %12 : vector<128x1xf32> to vector<128x64xf32>
    %23 = arith.subf %8, %22 : vector<128x64xf32>
    %cst_12 = arith.constant 9.99999974E-6 : f32
    %24 = vector.broadcast %cst_12 : f32 to vector<128x1xf32>
    %25 = arith.addf %21, %24 : vector<128x1xf32>
    %26 = math.rsqrt %25 : vector<128x1xf32>
    %27 = vector.broadcast %26 : vector<128x1xf32> to vector<128x64xf32>
    %28 = arith.mulf %23, %27 : vector<128x64xf32>
    %29 = vector.broadcast %5 : vector<1x64xf32> to vector<128x64xf32>
    %30 = arith.mulf %28, %29 : vector<128x64xf32>
    %31 = vector.broadcast %6 : vector<1x64xf32> to vector<128x64xf32>
    %32 = arith.addf %30, %31 : vector<128x64xf32>
    %cst_13 = arith.constant 0.000000e+00 : f32
    %33 = vector.broadcast %cst_13 : f32 to vector<128x64xf32>
    %34 = arith.maximumf %32, %33 : vector<128x64xf32>
    %35 = arith.truncf %34 : vector<128x64xf32> to vector<128x64xbf16>
    %c0_14 = arith.constant 0 : index
    %c0_15 = arith.constant 0 : index
    %36 = vector.load %arg4[%c0_14, %c0_15] : memref<768x256xbf16, #tpu.memory_space<vmem>>, vector<64x64xbf16>
    %cst_16 = arith.constant dense<0.000000e+00> : vector<128x64xf32>
    %37 = tpu.matmul %35, %36, %cst_16 {dimension_numbers = #tpu.dot_dimension_numbers<[1], [0], [0], [1], [0, 0, 1, 1], [], []>} : vector<128x64xbf16>, vector<64x64xbf16>, vector<128x64xf32> -> vector<128x64xf32>
    %c9 = arith.constant 9 : index
    %c0_17 = arith.constant 0 : index
    %38 = vector.load %arg3[%c9, %c0_17] : memref<32x256xf32, #tpu.memory_space<vmem>>, vector<1x64xf32>
    %c10 = arith.constant 10 : index
    %c0_18 = arith.constant 0 : index
    %39 = vector.load %arg3[%c10, %c0_18] : memref<32x256xf32, #tpu.memory_space<vmem>>, vector<1x64xf32>
    %c11 = arith.constant 11 : index
    %c0_19 = arith.constant 0 : index
    %40 = vector.load %arg3[%c11, %c0_19] : memref<32x256xf32, #tpu.memory_space<vmem>>, vector<1x64xf32>
    %41 = vector.broadcast %38 : vector<1x64xf32> to vector<128x64xf32>
    %42 = arith.addf %37, %41 : vector<128x64xf32>
    %cst_20 = arith.constant dense<0.000000e+00> : vector<128xf32>
    %43 = vector.multi_reduction <add>, %42, %cst_20 [1] : vector<128x64xf32> to vector<128xf32>
    %44 = vector.shape_cast %43 : vector<128xf32> to vector<128x1xf32>
    %cst_21 = arith.constant 6.400000e+01 : f32
    %45 = vector.broadcast %cst_21 : f32 to vector<128x1xf32>
    %46 = arith.divf %44, %45 : vector<128x1xf32>
    %47 = arith.mulf %42, %42 : vector<128x64xf32>
    %cst_22 = arith.constant dense<0.000000e+00> : vector<128xf32>
    %48 = vector.multi_reduction <add>, %47, %cst_22 [1] : vector<128x64xf32> to vector<128xf32>
    %49 = vector.shape_cast %48 : vector<128xf32> to vector<128x1xf32>
    %cst_23 = arith.constant 6.400000e+01 : f32
    %50 = vector.broadcast %cst_23 : f32 to vector<128x1xf32>
    %51 = arith.divf %49, %50 : vector<128x1xf32>
    %52 = arith.mulf %46, %46 : vector<128x1xf32>
    %53 = arith.subf %51, %52 : vector<128x1xf32>
    %cst_24 = arith.constant 0.000000e+00 : f32
    %54 = vector.broadcast %cst_24 : f32 to vector<128x1xf32>
    %55 = arith.maximumf %53, %54 : vector<128x1xf32>
    %56 = vector.broadcast %46 : vector<128x1xf32> to vector<128x64xf32>
    %57 = arith.subf %42, %56 : vector<128x64xf32>
    %cst_25 = arith.constant 9.99999974E-6 : f32
    %58 = vector.broadcast %cst_25 : f32 to vector<128x1xf32>
    %59 = arith.addf %55, %58 : vector<128x1xf32>
    %60 = math.rsqrt %59 : vector<128x1xf32>
    %61 = vector.broadcast %60 : vector<128x1xf32> to vector<128x64xf32>
    %62 = arith.mulf %57, %61 : vector<128x64xf32>
    %63 = vector.broadcast %39 : vector<1x64xf32> to vector<128x64xf32>
    %64 = arith.mulf %62, %63 : vector<128x64xf32>
    %65 = vector.broadcast %40 : vector<1x64xf32> to vector<128x64xf32>
    %66 = arith.addf %64, %65 : vector<128x64xf32>
    %cst_26 = arith.constant 0.000000e+00 : f32
    %67 = vector.broadcast %cst_26 : f32 to vector<128x64xf32>
    %68 = arith.maximumf %66, %67 : vector<128x64xf32>
    %69 = arith.truncf %68 : vector<128x64xf32> to vector<128x64xbf16>
    %c64 = arith.constant 64 : index
    %c0_27 = arith.constant 0 : index
    %70 = vector.load %arg4[%c64, %c0_27] : memref<768x256xbf16, #tpu.memory_space<vmem>>, vector<64x256xbf16>
    %cst_28 = arith.constant dense<0.000000e+00> : vector<128x256xf32>
    %71 = tpu.matmul %69, %70, %cst_28 {dimension_numbers = #tpu.dot_dimension_numbers<[1], [0], [0], [1], [0, 0, 1, 1], [], []>} : vector<128x64xbf16>, vector<64x256xbf16>, vector<128x256xf32> -> vector<128x256xf32>
    %c12 = arith.constant 12 : index
    %c0_29 = arith.constant 0 : index
    %72 = vector.load %arg3[%c12, %c0_29] : memref<32x256xf32, #tpu.memory_space<vmem>>, vector<1x256xf32>
    %c13 = arith.constant 13 : index
    %c0_30 = arith.constant 0 : index
    %73 = vector.load %arg3[%c13, %c0_30] : memref<32x256xf32, #tpu.memory_space<vmem>>, vector<1x256xf32>
    %c14 = arith.constant 14 : index
    %c0_31 = arith.constant 0 : index
    %74 = vector.load %arg3[%c14, %c0_31] : memref<32x256xf32, #tpu.memory_space<vmem>>, vector<1x256xf32>
    %75 = vector.broadcast %72 : vector<1x256xf32> to vector<128x256xf32>
    %76 = arith.addf %71, %75 : vector<128x256xf32>
    %cst_32 = arith.constant dense<0.000000e+00> : vector<128xf32>
    %77 = vector.multi_reduction <add>, %76, %cst_32 [1] : vector<128x256xf32> to vector<128xf32>
    %78 = vector.shape_cast %77 : vector<128xf32> to vector<128x1xf32>
    %cst_33 = arith.constant 2.560000e+02 : f32
    %79 = vector.broadcast %cst_33 : f32 to vector<128x1xf32>
    %80 = arith.divf %78, %79 : vector<128x1xf32>
    %81 = arith.mulf %76, %76 : vector<128x256xf32>
    %cst_34 = arith.constant dense<0.000000e+00> : vector<128xf32>
    %82 = vector.multi_reduction <add>, %81, %cst_34 [1] : vector<128x256xf32> to vector<128xf32>
    %83 = vector.shape_cast %82 : vector<128xf32> to vector<128x1xf32>
    %cst_35 = arith.constant 2.560000e+02 : f32
    %84 = vector.broadcast %cst_35 : f32 to vector<128x1xf32>
    %85 = arith.divf %83, %84 : vector<128x1xf32>
    %86 = arith.mulf %80, %80 : vector<128x1xf32>
    %87 = arith.subf %85, %86 : vector<128x1xf32>
    %cst_36 = arith.constant 0.000000e+00 : f32
    %88 = vector.broadcast %cst_36 : f32 to vector<128x1xf32>
    %89 = arith.maximumf %87, %88 : vector<128x1xf32>
    %90 = vector.broadcast %80 : vector<128x1xf32> to vector<128x256xf32>
    %91 = arith.subf %76, %90 : vector<128x256xf32>
    %cst_37 = arith.constant 9.99999974E-6 : f32
    %92 = vector.broadcast %cst_37 : f32 to vector<128x1xf32>
    %93 = arith.addf %89, %92 : vector<128x1xf32>
    %94 = math.rsqrt %93 : vector<128x1xf32>
    %95 = vector.broadcast %94 : vector<128x1xf32> to vector<128x256xf32>
    %96 = arith.mulf %91, %95 : vector<128x256xf32>
    %97 = vector.broadcast %73 : vector<1x256xf32> to vector<128x256xf32>
    %98 = arith.mulf %96, %97 : vector<128x256xf32>
    %99 = vector.broadcast %74 : vector<1x256xf32> to vector<128x256xf32>
    %100 = arith.addf %98, %99 : vector<128x256xf32>
    %cst_38 = arith.constant 0.000000e+00 : f32
    %101 = vector.broadcast %cst_38 : f32 to vector<128x256xf32>
    %102 = arith.maximumf %100, %101 : vector<128x256xf32>
    %103 = vector.shape_cast %102 : vector<128x256xf32> to vector<8x16x256xf32>
    %104 = vector.extract_strided_slice %103 {offsets = [0, 0, 0], sizes = [1, 16, 256], strides = [1, 1, 1]} : vector<8x16x256xf32> to vector<1x16x256xf32>
    %105 = vector.shape_cast %104 : vector<1x16x256xf32> to vector<16x256xf32>
    %106 = vector.extract_strided_slice %103 {offsets = [1, 0, 0], sizes = [1, 16, 256], strides = [1, 1, 1]} : vector<8x16x256xf32> to vector<1x16x256xf32>
    %107 = vector.shape_cast %106 : vector<1x16x256xf32> to vector<16x256xf32>
    %108 = arith.maximumf %105, %107 : vector<16x256xf32>
    %109 = vector.extract_strided_slice %103 {offsets = [2, 0, 0], sizes = [1, 16, 256], strides = [1, 1, 1]} : vector<8x16x256xf32> to vector<1x16x256xf32>
    %110 = vector.shape_cast %109 : vector<1x16x256xf32> to vector<16x256xf32>
    %111 = vector.extract_strided_slice %103 {offsets = [3, 0, 0], sizes = [1, 16, 256], strides = [1, 1, 1]} : vector<8x16x256xf32> to vector<1x16x256xf32>
    %112 = vector.shape_cast %111 : vector<1x16x256xf32> to vector<16x256xf32>
    %113 = arith.maximumf %110, %112 : vector<16x256xf32>
    %114 = vector.extract_strided_slice %103 {offsets = [4, 0, 0], sizes = [1, 16, 256], strides = [1, 1, 1]} : vector<8x16x256xf32> to vector<1x16x256xf32>
    %115 = vector.shape_cast %114 : vector<1x16x256xf32> to vector<16x256xf32>
    %116 = vector.extract_strided_slice %103 {offsets = [5, 0, 0], sizes = [1, 16, 256], strides = [1, 1, 1]} : vector<8x16x256xf32> to vector<1x16x256xf32>
    %117 = vector.shape_cast %116 : vector<1x16x256xf32> to vector<16x256xf32>
    %118 = arith.maximumf %115, %117 : vector<16x256xf32>
    %119 = vector.extract_strided_slice %103 {offsets = [6, 0, 0], sizes = [1, 16, 256], strides = [1, 1, 1]} : vector<8x16x256xf32> to vector<1x16x256xf32>
    %120 = vector.shape_cast %119 : vector<1x16x256xf32> to vector<16x256xf32>
    %121 = vector.extract_strided_slice %103 {offsets = [7, 0, 0], sizes = [1, 16, 256], strides = [1, 1, 1]} : vector<8x16x256xf32> to vector<1x16x256xf32>
    %122 = vector.shape_cast %121 : vector<1x16x256xf32> to vector<16x256xf32>
    %123 = arith.maximumf %120, %122 : vector<16x256xf32>
    %124 = arith.maximumf %108, %113 : vector<16x256xf32>
    %125 = arith.maximumf %118, %123 : vector<16x256xf32>
    %126 = arith.maximumf %124, %125 : vector<16x256xf32>
    %c0_39 = arith.constant 0 : index
    %c0_40 = arith.constant 0 : index
    %127 = vector.load %arg2[%c0_39, %c0_40] : memref<16x3xf32, #tpu.memory_space<vmem>>, vector<16x3xf32>
    %c3 = arith.constant 3 : index
    %c0_41 = arith.constant 0 : index
    %128 = vector.load %arg3[%c3, %c0_41] : memref<32x256xf32, #tpu.memory_space<vmem>>, vector<3x64xf32>
    %cst_42 = arith.constant dense<0.000000e+00> : vector<16x64xf32>
    %129 = tpu.matmul %127, %128, %cst_42 {dimension_numbers = #tpu.dot_dimension_numbers<[1], [0], [0], [1], [0, 0, 1, 1], [], []>} : vector<16x3xf32>, vector<3x64xf32>, vector<16x64xf32> -> vector<16x64xf32>
    %c15 = arith.constant 15 : index
    %c0_43 = arith.constant 0 : index
    %130 = vector.load %arg3[%c15, %c0_43] : memref<32x256xf32, #tpu.memory_space<vmem>>, vector<1x64xf32>
    %c16 = arith.constant 16 : index
    %c0_44 = arith.constant 0 : index
    %131 = vector.load %arg3[%c16, %c0_44] : memref<32x256xf32, #tpu.memory_space<vmem>>, vector<1x64xf32>
    %c17 = arith.constant 17 : index
    %c0_45 = arith.constant 0 : index
    %132 = vector.load %arg3[%c17, %c0_45] : memref<32x256xf32, #tpu.memory_space<vmem>>, vector<1x64xf32>
    %133 = vector.broadcast %130 : vector<1x64xf32> to vector<16x64xf32>
    %134 = arith.addf %129, %133 : vector<16x64xf32>
    %cst_46 = arith.constant dense<0.000000e+00> : vector<16xf32>
    %135 = vector.multi_reduction <add>, %134, %cst_46 [1] : vector<16x64xf32> to vector<16xf32>
    %136 = vector.shape_cast %135 : vector<16xf32> to vector<16x1xf32>
    %cst_47 = arith.constant 6.400000e+01 : f32
    %137 = vector.broadcast %cst_47 : f32 to vector<16x1xf32>
    %138 = arith.divf %136, %137 : vector<16x1xf32>
    %139 = arith.mulf %134, %134 : vector<16x64xf32>
    %cst_48 = arith.constant dense<0.000000e+00> : vector<16xf32>
    %140 = vector.multi_reduction <add>, %139, %cst_48 [1] : vector<16x64xf32> to vector<16xf32>
    %141 = vector.shape_cast %140 : vector<16xf32> to vector<16x1xf32>
    %cst_49 = arith.constant 6.400000e+01 : f32
    %142 = vector.broadcast %cst_49 : f32 to vector<16x1xf32>
    %143 = arith.divf %141, %142 : vector<16x1xf32>
    %144 = arith.mulf %138, %138 : vector<16x1xf32>
    %145 = arith.subf %143, %144 : vector<16x1xf32>
    %cst_50 = arith.constant 0.000000e+00 : f32
    %146 = vector.broadcast %cst_50 : f32 to vector<16x1xf32>
    %147 = arith.maximumf %145, %146 : vector<16x1xf32>
    %148 = vector.broadcast %138 : vector<16x1xf32> to vector<16x64xf32>
    %149 = arith.subf %134, %148 : vector<16x64xf32>
    %cst_51 = arith.constant 9.99999974E-6 : f32
    %150 = vector.broadcast %cst_51 : f32 to vector<16x1xf32>
    %151 = arith.addf %147, %150 : vector<16x1xf32>
    %152 = math.rsqrt %151 : vector<16x1xf32>
    %153 = vector.broadcast %152 : vector<16x1xf32> to vector<16x64xf32>
    %154 = arith.mulf %149, %153 : vector<16x64xf32>
    %155 = vector.broadcast %131 : vector<1x64xf32> to vector<16x64xf32>
    %156 = arith.mulf %154, %155 : vector<16x64xf32>
    %157 = vector.broadcast %132 : vector<1x64xf32> to vector<16x64xf32>
    %158 = arith.addf %156, %157 : vector<16x64xf32>
    %cst_52 = arith.constant 0.000000e+00 : f32
    %159 = vector.broadcast %cst_52 : f32 to vector<16x64xf32>
    %160 = arith.maximumf %158, %159 : vector<16x64xf32>
    %161 = arith.truncf %160 : vector<16x64xf32> to vector<16x64xbf16>
    %c128 = arith.constant 128 : index
    %c0_53 = arith.constant 0 : index
    %162 = vector.load %arg4[%c128, %c0_53] : memref<768x256xbf16, #tpu.memory_space<vmem>>, vector<64x64xbf16>
    %cst_54 = arith.constant dense<0.000000e+00> : vector<16x64xf32>
    %163 = tpu.matmul %161, %162, %cst_54 {dimension_numbers = #tpu.dot_dimension_numbers<[1], [0], [0], [1], [0, 0, 1, 1], [], []>} : vector<16x64xbf16>, vector<64x64xbf16>, vector<16x64xf32> -> vector<16x64xf32>
    %c18 = arith.constant 18 : index
    %c0_55 = arith.constant 0 : index
    %164 = vector.load %arg3[%c18, %c0_55] : memref<32x256xf32, #tpu.memory_space<vmem>>, vector<1x64xf32>
    %c19 = arith.constant 19 : index
    %c0_56 = arith.constant 0 : index
    %165 = vector.load %arg3[%c19, %c0_56] : memref<32x256xf32, #tpu.memory_space<vmem>>, vector<1x64xf32>
    %c20 = arith.constant 20 : index
    %c0_57 = arith.constant 0 : index
    %166 = vector.load %arg3[%c20, %c0_57] : memref<32x256xf32, #tpu.memory_space<vmem>>, vector<1x64xf32>
    %167 = vector.broadcast %164 : vector<1x64xf32> to vector<16x64xf32>
    %168 = arith.addf %163, %167 : vector<16x64xf32>
    %cst_58 = arith.constant dense<0.000000e+00> : vector<16xf32>
    %169 = vector.multi_reduction <add>, %168, %cst_58 [1] : vector<16x64xf32> to vector<16xf32>
    %170 = vector.shape_cast %169 : vector<16xf32> to vector<16x1xf32>
    %cst_59 = arith.constant 6.400000e+01 : f32
    %171 = vector.broadcast %cst_59 : f32 to vector<16x1xf32>
    %172 = arith.divf %170, %171 : vector<16x1xf32>
    %173 = arith.mulf %168, %168 : vector<16x64xf32>
    %cst_60 = arith.constant dense<0.000000e+00> : vector<16xf32>
    %174 = vector.multi_reduction <add>, %173, %cst_60 [1] : vector<16x64xf32> to vector<16xf32>
    %175 = vector.shape_cast %174 : vector<16xf32> to vector<16x1xf32>
    %cst_61 = arith.constant 6.400000e+01 : f32
    %176 = vector.broadcast %cst_61 : f32 to vector<16x1xf32>
    %177 = arith.divf %175, %176 : vector<16x1xf32>
    %178 = arith.mulf %172, %172 : vector<16x1xf32>
    %179 = arith.subf %177, %178 : vector<16x1xf32>
    %cst_62 = arith.constant 0.000000e+00 : f32
    %180 = vector.broadcast %cst_62 : f32 to vector<16x1xf32>
    %181 = arith.maximumf %179, %180 : vector<16x1xf32>
    %182 = vector.broadcast %172 : vector<16x1xf32> to vector<16x64xf32>
    %183 = arith.subf %168, %182 : vector<16x64xf32>
    %cst_63 = arith.constant 9.99999974E-6 : f32
    %184 = vector.broadcast %cst_63 : f32 to vector<16x1xf32>
    %185 = arith.addf %181, %184 : vector<16x1xf32>
    %186 = math.rsqrt %185 : vector<16x1xf32>
    %187 = vector.broadcast %186 : vector<16x1xf32> to vector<16x64xf32>
    %188 = arith.mulf %183, %187 : vector<16x64xf32>
    %189 = vector.broadcast %165 : vector<1x64xf32> to vector<16x64xf32>
    %190 = arith.mulf %188, %189 : vector<16x64xf32>
    %191 = vector.broadcast %166 : vector<1x64xf32> to vector<16x64xf32>
    %192 = arith.addf %190, %191 : vector<16x64xf32>
    %cst_64 = arith.constant 0.000000e+00 : f32
    %193 = vector.broadcast %cst_64 : f32 to vector<16x64xf32>
    %194 = arith.maximumf %192, %193 : vector<16x64xf32>
    %195 = arith.truncf %194 : vector<16x64xf32> to vector<16x64xbf16>
    %c192 = arith.constant 192 : index
    %c0_65 = arith.constant 0 : index
    %196 = vector.load %arg4[%c192, %c0_65] : memref<768x256xbf16, #tpu.memory_space<vmem>>, vector<64x256xbf16>
    %cst_66 = arith.constant dense<0.000000e+00> : vector<16x256xf32>
    %197 = tpu.matmul %195, %196, %cst_66 {dimension_numbers = #tpu.dot_dimension_numbers<[1], [0], [0], [1], [0, 0, 1, 1], [], []>} : vector<16x64xbf16>, vector<64x256xbf16>, vector<16x256xf32> -> vector<16x256xf32>
    %c21 = arith.constant 21 : index
    %c0_67 = arith.constant 0 : index
    %198 = vector.load %arg3[%c21, %c0_67] : memref<32x256xf32, #tpu.memory_space<vmem>>, vector<1x256xf32>
    %c22 = arith.constant 22 : index
    %c0_68 = arith.constant 0 : index
    %199 = vector.load %arg3[%c22, %c0_68] : memref<32x256xf32, #tpu.memory_space<vmem>>, vector<1x256xf32>
    %c23 = arith.constant 23 : index
    %c0_69 = arith.constant 0 : index
    %200 = vector.load %arg3[%c23, %c0_69] : memref<32x256xf32, #tpu.memory_space<vmem>>, vector<1x256xf32>
    %201 = vector.broadcast %198 : vector<1x256xf32> to vector<16x256xf32>
    %202 = arith.addf %197, %201 : vector<16x256xf32>
    %cst_70 = arith.constant dense<0.000000e+00> : vector<16xf32>
    %203 = vector.multi_reduction <add>, %202, %cst_70 [1] : vector<16x256xf32> to vector<16xf32>
    %204 = vector.shape_cast %203 : vector<16xf32> to vector<16x1xf32>
    %cst_71 = arith.constant 2.560000e+02 : f32
    %205 = vector.broadcast %cst_71 : f32 to vector<16x1xf32>
    %206 = arith.divf %204, %205 : vector<16x1xf32>
    %207 = arith.mulf %202, %202 : vector<16x256xf32>
    %cst_72 = arith.constant dense<0.000000e+00> : vector<16xf32>
    %208 = vector.multi_reduction <add>, %207, %cst_72 [1] : vector<16x256xf32> to vector<16xf32>
    %209 = vector.shape_cast %208 : vector<16xf32> to vector<16x1xf32>
    %cst_73 = arith.constant 2.560000e+02 : f32
    %210 = vector.broadcast %cst_73 : f32 to vector<16x1xf32>
    %211 = arith.divf %209, %210 : vector<16x1xf32>
    %212 = arith.mulf %206, %206 : vector<16x1xf32>
    %213 = arith.subf %211, %212 : vector<16x1xf32>
    %cst_74 = arith.constant 0.000000e+00 : f32
    %214 = vector.broadcast %cst_74 : f32 to vector<16x1xf32>
    %215 = arith.maximumf %213, %214 : vector<16x1xf32>
    %216 = vector.broadcast %206 : vector<16x1xf32> to vector<16x256xf32>
    %217 = arith.subf %202, %216 : vector<16x256xf32>
    %cst_75 = arith.constant 9.99999974E-6 : f32
    %218 = vector.broadcast %cst_75 : f32 to vector<16x1xf32>
    %219 = arith.addf %215, %218 : vector<16x1xf32>
    %220 = math.rsqrt %219 : vector<16x1xf32>
    %221 = vector.broadcast %220 : vector<16x1xf32> to vector<16x256xf32>
    %222 = arith.mulf %217, %221 : vector<16x256xf32>
    %223 = vector.broadcast %199 : vector<1x256xf32> to vector<16x256xf32>
    %224 = arith.mulf %222, %223 : vector<16x256xf32>
    %225 = vector.broadcast %200 : vector<1x256xf32> to vector<16x256xf32>
    %226 = arith.addf %224, %225 : vector<16x256xf32>
    %cst_76 = arith.constant 0.000000e+00 : f32
    %227 = vector.broadcast %cst_76 : f32 to vector<16x256xf32>
    %228 = arith.maximumf %226, %227 : vector<16x256xf32>
    %229 = arith.truncf %126 : vector<16x256xf32> to vector<16x256xbf16>
    %c256 = arith.constant 256 : index
    %c0_77 = arith.constant 0 : index
    %230 = vector.load %arg4[%c256, %c0_77] : memref<768x256xbf16, #tpu.memory_space<vmem>>, vector<256x256xbf16>
    %cst_78 = arith.constant dense<0.000000e+00> : vector<16x256xf32>
    %231 = tpu.matmul %229, %230, %cst_78 {dimension_numbers = #tpu.dot_dimension_numbers<[1], [0], [0], [1], [0, 0, 1, 1], [], []>} : vector<16x256xbf16>, vector<256x256xbf16>, vector<16x256xf32> -> vector<16x256xf32>
    %232 = arith.truncf %228 : vector<16x256xf32> to vector<16x256xbf16>
    %c512 = arith.constant 512 : index
    %c0_79 = arith.constant 0 : index
    %233 = vector.load %arg4[%c512, %c0_79] : memref<768x256xbf16, #tpu.memory_space<vmem>>, vector<256x256xbf16>
    %cst_80 = arith.constant dense<0.000000e+00> : vector<16x256xf32>
    %234 = tpu.matmul %232, %233, %cst_80 {dimension_numbers = #tpu.dot_dimension_numbers<[1], [0], [0], [1], [0, 0, 1, 1], [], []>} : vector<16x256xbf16>, vector<256x256xbf16>, vector<16x256xf32> -> vector<16x256xf32>
    %235 = arith.addf %231, %234 : vector<16x256xf32>
    %c24 = arith.constant 24 : index
    %c0_81 = arith.constant 0 : index
    %236 = vector.load %arg3[%c24, %c0_81] : memref<32x256xf32, #tpu.memory_space<vmem>>, vector<1x256xf32>
    %c25 = arith.constant 25 : index
    %c0_82 = arith.constant 0 : index
    %237 = vector.load %arg3[%c25, %c0_82] : memref<32x256xf32, #tpu.memory_space<vmem>>, vector<1x256xf32>
    %c26 = arith.constant 26 : index
    %c0_83 = arith.constant 0 : index
    %238 = vector.load %arg3[%c26, %c0_83] : memref<32x256xf32, #tpu.memory_space<vmem>>, vector<1x256xf32>
    %239 = vector.broadcast %236 : vector<1x256xf32> to vector<16x256xf32>
    %240 = arith.addf %235, %239 : vector<16x256xf32>
    %cst_84 = arith.constant dense<0.000000e+00> : vector<16xf32>
    %241 = vector.multi_reduction <add>, %240, %cst_84 [1] : vector<16x256xf32> to vector<16xf32>
    %242 = vector.shape_cast %241 : vector<16xf32> to vector<16x1xf32>
    %cst_85 = arith.constant 2.560000e+02 : f32
    %243 = vector.broadcast %cst_85 : f32 to vector<16x1xf32>
    %244 = arith.divf %242, %243 : vector<16x1xf32>
    %245 = arith.mulf %240, %240 : vector<16x256xf32>
    %cst_86 = arith.constant dense<0.000000e+00> : vector<16xf32>
    %246 = vector.multi_reduction <add>, %245, %cst_86 [1] : vector<16x256xf32> to vector<16xf32>
    %247 = vector.shape_cast %246 : vector<16xf32> to vector<16x1xf32>
    %cst_87 = arith.constant 2.560000e+02 : f32
    %248 = vector.broadcast %cst_87 : f32 to vector<16x1xf32>
    %249 = arith.divf %247, %248 : vector<16x1xf32>
    %250 = arith.mulf %244, %244 : vector<16x1xf32>
    %251 = arith.subf %249, %250 : vector<16x1xf32>
    %cst_88 = arith.constant 0.000000e+00 : f32
    %252 = vector.broadcast %cst_88 : f32 to vector<16x1xf32>
    %253 = arith.maximumf %251, %252 : vector<16x1xf32>
    %254 = vector.broadcast %244 : vector<16x1xf32> to vector<16x256xf32>
    %255 = arith.subf %240, %254 : vector<16x256xf32>
    %cst_89 = arith.constant 9.99999974E-6 : f32
    %256 = vector.broadcast %cst_89 : f32 to vector<16x1xf32>
    %257 = arith.addf %253, %256 : vector<16x1xf32>
    %258 = math.rsqrt %257 : vector<16x1xf32>
    %259 = vector.broadcast %258 : vector<16x1xf32> to vector<16x256xf32>
    %260 = arith.mulf %255, %259 : vector<16x256xf32>
    %261 = vector.broadcast %237 : vector<1x256xf32> to vector<16x256xf32>
    %262 = arith.mulf %260, %261 : vector<16x256xf32>
    %263 = vector.broadcast %238 : vector<1x256xf32> to vector<16x256xf32>
    %264 = arith.addf %262, %263 : vector<16x256xf32>
    %cst_90 = arith.constant 0.000000e+00 : f32
    %265 = vector.broadcast %cst_90 : f32 to vector<16x256xf32>
    %266 = arith.maximumf %264, %265 : vector<16x256xf32>
    %c0_91 = arith.constant 0 : index
    %c0_92 = arith.constant 0 : index
    %267 = vector.load %arg5[%c0_91, %c0_92] : memref<16x256xf32, #tpu.memory_space<vmem>>, vector<16x256xf32>
    tpu.vector_store %arg5[%c0_91, %c0_92], %266 {strides = array<i32>} : memref<16x256xf32, #tpu.memory_space<vmem>>, vector<16x256xf32>,
    return
  }
  func.func @transform_0(%arg0: i32) -> (i32, i32, i32) {
    %c0_i32 = arith.constant 0 : i32
    %c0_i32_0 = arith.constant 0 : i32
    %c0_i32_1 = arith.constant 0 : i32
    return %c0_i32, %arg0, %c0_i32_0 : i32, i32, i32
  }
  func.func @transform_1(%arg0: i32) -> (i32, i32) {
    %c0_i32 = arith.constant 0 : i32
    %c0_i32_0 = arith.constant 0 : i32
    return %arg0, %c0_i32 : i32, i32
  }
  func.func @transform_2(%arg0: i32) -> (i32, i32) {
    %c0_i32 = arith.constant 0 : i32
    %c0_i32_0 = arith.constant 0 : i32
    %c0_i32_1 = arith.constant 0 : i32
    return %c0_i32, %c0_i32_0 : i32, i32
  }
  func.func @transform_3(%arg0: i32) -> (i32, i32) {
    %c0_i32 = arith.constant 0 : i32
    %c0_i32_0 = arith.constant 0 : i32
    %c0_i32_1 = arith.constant 0 : i32
    return %c0_i32, %c0_i32_0 : i32, i32
  }
  func.func @transform_4(%arg0: i32) -> (i32, i32) {
    %c0_i32 = arith.constant 0 : i32
    %c0_i32_0 = arith.constant 0 : i32
    return %arg0, %c0_i32 : i32, i32
  }
}

</mosaic_0001>

<llo_original>
// kernel: tpu_custom_call.1
$region0: #{tpu_custom_call.1}
  #allocation0 [shape = 'u32[]', space=smem, size = 0x4, offset = 0x4, fixed_abs, tag = 'smem constant byte address 0x4 - core index']
  #allocation1 [shape = 'u32[144,128]{1,0:T(1,128)}', space=vmem, size = 0x12000, scoped, tag = 'internal scratch']
  %s0 = inlined_call_operand.hbm [shape: f32[8,16,3], index: 0, kind: input, shape index: {}]
  %s1 = inlined_call_operand.hbm [shape: f32[16,3], index: 1, kind: input, shape index: {}]
  %s2 = inlined_call_operand.hbm [shape: f32[32,256], index: 2, kind: input, shape index: {}]
  %s3 = inlined_call_operand.hbm [shape: bf16[768,256], index: 3, kind: input, shape index: {}]
  %s4 = inlined_call_operand.hbm [shape: f32[16,256], index: 4, kind: output, shape index: {}]
  %s5 = sld [smem:[#allocation0]]
  $region42: #{tpu_custom_call.1} parent=0
    _
  %s7 = ssub.s32 1, %s5
  %s8 = scalar_select 0, %s7, %s5
  $region1: #{tpu_custom_call.1} parent=0
    #allocation2 [shape = 'u8[65536]{0}', space=vmem, size = 0x10000, scoped, tag = 'input window, operand 0, single buffered']
    #allocation3 [shape = 's32[1]{0}', space=sflag, size = 0x4, scoped, tag = 'scoped memory for tpu_custom_call.1']
    #allocation4 [shape = 's32[1]{0}', space=sflag, size = 0x4, scoped, tag = 'scoped memory for tpu_custom_call.1']
    #allocation5 [shape = 'u8[8192]{0}', space=vmem, size = 0x2000, scoped, tag = 'input window, operand 1, single buffered']
    #allocation6 [shape = 's32[1]{0}', space=sflag, size = 0x4, scoped, tag = 'scoped memory for tpu_custom_call.1']
    #allocation7 [shape = 'u8[32768]{0}', space=vmem, size = 0x8000, scoped, tag = 'input window, operand 2, single buffered']
    #allocation8 [shape = 'u8[393216]{0}', space=vmem, size = 0x60000, scoped, tag = 'input window, operand 3, single buffered']
    #allocation9 [shape = 's32[1]{0}', space=sflag, size = 0x4, scoped, tag = 'scoped memory for tpu_custom_call.1']
    #allocation10 [shape = 'u8[16384]{0}', space=vmem, size = 0x4000, scoped, tag = 'output window, operand 0, single buffered']
    %9 = vsyncpa [#allocation3], 0
    %10 = vsyncpa [#allocation6], 0
    %11 = vsyncpa [#allocation9], 0
    %12 = vsyncpa [#allocation4], 0
    // Predicated region
    $region2: #{tpu_custom_call.1} parent=1 // pred_check
      _
    $region3: #{tpu_custom_call.1} parent=1 // pred_check_branch
      %14 = sbr.rel (0) target = $region5
    $region4: #{tpu_custom_call.1} parent=1 // pred_region
      %s16 = ssub.s32 2048, 2048
      %17 = vsyncadd [#allocation3], %s16
      %s18 = sshll.u32 [#allocation2], 4
      %s19 = int_to_ptr.vmem [resolvable:$true] %s18
      %24 = dma.hbm_to_vmem [thread:$0]  %s0, 2048, %s19, [#allocation3], 128, 128, 8
    $region5: #{tpu_custom_call.1} parent=1 // pred_fallthru
      _
    // Predicated region
    $region6: #{tpu_custom_call.1} parent=1 // pred_check
      _
    $region7: #{tpu_custom_call.1} parent=1 // pred_check_branch
      %26 = sbr.rel (0) target = $region9
    $region8: #{tpu_custom_call.1} parent=1 // pred_region
      %s28 = ssub.s32 256, 256
      %29 = vsyncadd [#allocation6], %s28
      %s30 = sshll.u32 [#allocation5], 4
      %s31 = int_to_ptr.vmem [resolvable:$true] %s30
      %36 = dma.hbm_to_vmem [thread:$0]  %s1, 256, %s31, [#allocation6], 128, 128, 8
    $region9: #{tpu_custom_call.1} parent=1 // pred_fallthru
      _
    // Predicated region
    $region10: #{tpu_custom_call.1} parent=1 // pred_check
      _
    $region11: #{tpu_custom_call.1} parent=1 // pred_check_branch
      %38 = sbr.rel (0) target = $region13
    $region12: #{tpu_custom_call.1} parent=1 // pred_region
      %s40 = ssub.s32 1024, 1024
      %41 = vsyncadd [#allocation6], %s40
      %s42 = sshll.u32 [#allocation7], 4
      %s43 = int_to_ptr.vmem [resolvable:$true] %s42
      %48 = dma.hbm_to_vmem [thread:$0]  %s2, 1024, %s43, [#allocation6], 256, 256, 16
    $region13: #{tpu_custom_call.1} parent=1 // pred_fallthru
      _
    // Predicated region
    $region14: #{tpu_custom_call.1} parent=1 // pred_check
      _
    $region15: #{tpu_custom_call.1} parent=1 // pred_check_branch
      %50 = sbr.rel (0) target = $region17
    $region16: #{tpu_custom_call.1} parent=1 // pred_region
      %s52 = ssub.s32 12288, 12288
      %53 = vsyncadd [#allocation9], %s52
      %s54 = sshll.u32 [#allocation8], 4
      %s55 = int_to_ptr.vmem [resolvable:$true] %s54
      %60 = dma.hbm_to_vmem [thread:$0]  %s3, 12288, %s55, [#allocation9], 128, 128, 8
    $region17: #{tpu_custom_call.1} parent=1 // pred_fallthru
      _
    // Predicated region
    $region18: #{tpu_custom_call.1} parent=1 // pred_check
      _
    $region19: #{tpu_custom_call.1} parent=1 // pred_check_branch
      %62 = sbr.rel (0) target = $region21
    $region20: #{tpu_custom_call.1} parent=1 // pred_region
      %63 = dma.done [#allocation3], 2048
    $region21: #{tpu_custom_call.1} parent=1 // pred_fallthru
      _
    // Predicated region
    $region22: #{tpu_custom_call.1} parent=1 // pred_check
      _
    $region23: #{tpu_custom_call.1} parent=1 // pred_check_branch
      %65 = sbr.rel (0) target = $region25
    $region24: #{tpu_custom_call.1} parent=1 // pred_region
      %66 = dma.done [#allocation6], 256
    $region25: #{tpu_custom_call.1} parent=1 // pred_fallthru
      _
    // Predicated region
    $region26: #{tpu_custom_call.1} parent=1 // pred_check
      _
    $region27: #{tpu_custom_call.1} parent=1 // pred_check_branch
      %68 = sbr.rel (0) target = $region29
    $region28: #{tpu_custom_call.1} parent=1 // pred_region
      %69 = dma.done [#allocation6], 1024
    $region29: #{tpu_custom_call.1} parent=1 // pred_fallthru
      _
    // Predicated region
    $region30: #{tpu_custom_call.1} parent=1 // pred_check
      _
    $region31: #{tpu_custom_call.1} parent=1 // pred_check_branch
      %71 = sbr.rel (0) target = $region33
    $region32: #{tpu_custom_call.1} parent=1 // pred_region
      %72 = dma.done [#allocation9], 12288
    $region33: #{tpu_custom_call.1} parent=1 // pred_fallthru
      _
    %v74 = vld [vmem:[#allocation2] sm:$0xff]
    %v75 = vld [vmem:[#allocation2 + $0x8] sm:$0xff]
    %v76 = vld [vmem:[#allocation2 + $0x10] sm:$0xff]
    %v77 = vld [vmem:[#allocation2 + $0x18] sm:$0xff]
    %v78 = vld [vmem:[#allocation2 + $0x20] sm:$0xff]
    %v79 = vld [vmem:[#allocation2 + $0x28] sm:$0xff]
    %v80 = vld [vmem:[#allocation2 + $0x30] sm:$0xff]
    %v81 = vld [vmem:[#allocation2 + $0x38] sm:$0xff]
    %v82 = vld [vmem:[#allocation2 + $0x40] sm:$0xff]
    %v83 = vld [vmem:[#allocation2 + $0x48] sm:$0xff]
    %v84 = vld [vmem:[#allocation2 + $0x50] sm:$0xff]
    %v85 = vld [vmem:[#allocation2 + $0x58] sm:$0xff]
    %v86 = vld [vmem:[#allocation2 + $0x60] sm:$0xff]
    %v87 = vld [vmem:[#allocation2 + $0x68] sm:$0xff]
    %v88 = vld [vmem:[#allocation2 + $0x70] sm:$0xff]
    %v89 = vld [vmem:[#allocation2 + $0x78] sm:$0xff]
    %v90 = vld [vmem:[#allocation7] sm:$0x7]
    %v91 = vld [vmem:[#allocation7 + $0x6] ss:$0 sm:$0xff]
    %v92 = vld [vmem:[#allocation7 + $0x7] ss:$0 sm:$0xff]
    %v93 = vld [vmem:[#allocation7 + $0x10] ss:$0 sm:$0xff]
    %vm94 = vcmask 23552
    %v96 = vsel %vm94, %v74, 0
    %v99 = vsel %vm94, %v75, 0
    %v102 = vsel %vm94, %v76, 0
    %v105 = vsel %vm94, %v77, 0
    %v108 = vsel %vm94, %v78, 0
    %v111 = vsel %vm94, %v79, 0
    %v114 = vsel %vm94, %v80, 0
    %v117 = vsel %vm94, %v81, 0
    %v120 = vsel %vm94, %v82, 0
    %v123 = vsel %vm94, %v83, 0
    %v126 = vsel %vm94, %v84, 0
    %v129 = vsel %vm94, %v85, 0
    %v132 = vsel %vm94, %v86, 0
    %v135 = vsel %vm94, %v87, 0
    %v138 = vsel %vm94, %v88, 0
    %v141 = vsel %vm94, %v89, 0
    %vm143 = vcmask 1042432
    %v145 = vsel %vm143, %v90, 0
    %147 = vmatprep.subr.mxu0 0.0
    %148 = vmatpush1.msra.mxu0 %v145
    %149 = vmatprep.subr.mxu0 0.0
    %150 = vmatpush1.msra.mxu0 0.0
    %151 = vmatprep.subr.mxu0 0.0
    %152 = vmatpush1.msra.mxu0 0.0
    %153 = vmatprep.subr.mxu0 0.0
    %154 = vmatpush1.msra.mxu0 0.0
    %155 = vmatprep.subr.mxu0 0.0
    %156 = vmatpush1.msra.mxu0 0.0
    %157 = vmatprep.subr.mxu0 0.0
    %158 = vmatpush1.msra.mxu0 0.0
    %159 = vmatprep.subr.mxu0 0.0
    %160 = vmatpush1.msra.mxu0 0.0
    %161 = vmatprep.subr.mxu0 0.0
    %162 = vmatpush1.msra.mxu0 0.0
    %163 = vmatprep.subr.mxu0 0.0
    %164 = vmatpush1.msra.mxu0 0.0
    %165 = vmatprep.subr.mxu0 0.0
    %166 = vmatpush1.msra.mxu0 0.0
    %167 = vmatprep.subr.mxu0 0.0
    %168 = vmatpush1.msra.mxu0 0.0
    %169 = vmatprep.subr.mxu0 0.0
    %170 = vmatpush1.msra.mxu0 0.0
    %171 = vmatprep.subr.mxu0 0.0
    %172 = vmatpush1.msra.mxu0 0.0
    %173 = vmatprep.subr.mxu0 0.0
    %174 = vmatpush1.msra.mxu0 0.0
    %175 = vmatprep.subr.mxu0 0.0
    %176 = vmatpush1.msra.mxu0 0.0
    %177 = vmatprep.subr.mxu0 0.0
    %178 = vmatpush1.msra.mxu0 0.0
    %179 = vmatprep.subr.mxu0 0.0
    %180 = vmatpush1.msra.mxu0 0.0
    %181 = vmatprep.subr.mxu0 0.0
    %182 = vmatpush1.msra.mxu0 0.0
    %183 = vmatprep.subr.mxu0 0.0
    %184 = vmatpush1.msra.mxu0 0.0
    %185 = vmatprep.subr.mxu0 0.0
    %186 = vmatpush1.msra.mxu0 0.0
    %187 = vmatprep.subr.mxu0 0.0
    %188 = vmatpush1.msra.mxu0 0.0
    %189 = vmatprep.subr.mxu0 0.0
    %190 = vmatpush1.msra.mxu0 0.0
    %191 = vmatprep.subr.mxu0 0.0
    %192 = vmatpush1.msra.mxu0 0.0
    %193 = vmatprep.subr.mxu0 0.0
    %194 = vmatpush1.msra.mxu0 0.0
    %195 = vmatprep.subr.mxu0 0.0
    %196 = vmatpush1.msra.mxu0 0.0
    %197 = vmatprep.subr.mxu0 0.0
    %198 = vmatpush1.msra.mxu0 0.0
    %199 = vmatprep.subr.mxu0 0.0
    %200 = vmatpush1.msra.mxu0 0.0
    %201 = vmatprep.subr.mxu0 0.0
    %202 = vmatpush1.msra.mxu0 0.0
    %203 = vmatprep.subr.mxu0 0.0
    %204 = vmatpush1.msra.mxu0 0.0
    %205 = vmatprep.subr.mxu0 0.0
    %206 = vmatpush1.msra.mxu0 0.0
    %207 = vmatprep.subr.mxu0 0.0
    %208 = vmatpush1.msra.mxu0 0.0
    %209 = vmatprep.subr.mxu0 0.0
    %210 = vmatpush1.msra.mxu0 0.0
    %211 = vmatprep.mubr.f32.mxu0 0.0
    %212 = vmatmul.mubr.f32.gmra.mrb[0].mxu0 %v96
    %v213 = vpop.f32.mrb[0].mxu0
    %v214 = vadd.f32 %v91, %v213
    %v215 = vpop.f32.mrb[0].mxu0
    %216 = vmatprep.mubr.f32.mxu0 0.0
    %217 = vmatmul.mubr.f32.gmra.mrb[0].mxu0 %v99
    %v218 = vpop.f32.mrb[0].mxu0
    %v219 = vadd.f32 %v91, %v218
    %v220 = vpop.f32.mrb[0].mxu0
    %221 = vmatprep.mubr.f32.mxu0 0.0
    %222 = vmatmul.mubr.f32.gmra.mrb[0].mxu0 %v102
    %v223 = vpop.f32.mrb[0].mxu0
    %v224 = vadd.f32 %v91, %v223
    %v225 = vpop.f32.mrb[0].mxu0
    %226 = vmatprep.mubr.f32.mxu0 0.0
    %227 = vmatmul.mubr.f32.gmra.mrb[0].mxu0 %v105
    %v228 = vpop.f32.mrb[0].mxu0
    %v229 = vadd.f32 %v91, %v228
    %v230 = vpop.f32.mrb[0].mxu0
    %231 = vmatprep.mubr.f32.mxu0 0.0
    %232 = vmatmul.mubr.f32.gmra.mrb[0].mxu0 %v108
    %v233 = vpop.f32.mrb[0].mxu0
    %v234 = vadd.f32 %v91, %v233
    %v235 = vpop.f32.mrb[0].mxu0
    %236 = vmatprep.mubr.f32.mxu0 0.0
    %237 = vmatmul.mubr.f32.gmra.mrb[0].mxu0 %v111
    %v238 = vpop.f32.mrb[0].mxu0
    %v239 = vadd.f32 %v91, %v238
    %v240 = vpop.f32.mrb[0].mxu0
    %241 = vmatprep.mubr.f32.mxu0 0.0
    %242 = vmatmul.mubr.f32.gmra.mrb[0].mxu0 %v114
    %v243 = vpop.f32.mrb[0].mxu0
    %v244 = vadd.f32 %v91, %v243
    %v245 = vpop.f32.mrb[0].mxu0
    %246 = vmatprep.mubr.f32.mxu0 0.0
    %247 = vmatmul.mubr.f32.gmra.mrb[0].mxu0 %v117
    %v248 = vpop.f32.mrb[0].mxu0
    %v249 = vadd.f32 %v91, %v248
    %v250 = vpop.f32.mrb[0].mxu0
    %251 = vmatprep.mubr.f32.mxu0 0.0
    %252 = vmatmul.mubr.f32.gmra.mrb[0].mxu0 %v120
    %v253 = vpop.f32.mrb[0].mxu0
    %v254 = vadd.f32 %v91, %v253
    %v255 = vpop.f32.mrb[0].mxu0
    %256 = vmatprep.mubr.f32.mxu0 0.0
    %257 = vmatmul.mubr.f32.gmra.mrb[0].mxu0 %v123
    %v258 = vpop.f32.mrb[0].mxu0
    %v259 = vadd.f32 %v91, %v258
    %v260 = vpop.f32.mrb[0].mxu0
    %261 = vmatprep.mubr.f32.mxu0 0.0
    %262 = vmatmul.mubr.f32.gmra.mrb[0].mxu0 %v126
    %v263 = vpop.f32.mrb[0].mxu0
    %v264 = vadd.f32 %v91, %v263
    %v265 = vpop.f32.mrb[0].mxu0
    %266 = vmatprep.mubr.f32.mxu0 0.0
    %267 = vmatmul.mubr.f32.gmra.mrb[0].mxu0 %v129
    %v268 = vpop.f32.mrb[0].mxu0
    %v269 = vadd.f32 %v91, %v268
    %v270 = vpop.f32.mrb[0].mxu0
    %271 = vmatprep.mubr.f32.mxu0 0.0
    %272 = vmatmul.mubr.f32.gmra.mrb[0].mxu0 %v132
    %v273 = vpop.f32.mrb[0].mxu0
    %v274 = vadd.f32 %v91, %v273
    %v275 = vpop.f32.mrb[0].mxu0
    %276 = vmatprep.mubr.f32.mxu0 0.0
    %277 = vmatmul.mubr.f32.gmra.mrb[0].mxu0 %v135
    %v278 = vpop.f32.mrb[0].mxu0
    %v279 = vadd.f32 %v91, %v278
    %v280 = vpop.f32.mrb[0].mxu0
    %281 = vmatprep.mubr.f32.mxu0 0.0
    %282 = vmatmul.mubr.f32.gmra.mrb[0].mxu0 %v138
    %v283 = vpop.f32.mrb[0].mxu0
    %v284 = vadd.f32 %v91, %v283
    %v285 = vpop.f32.mrb[0].mxu0
    %286 = vmatprep.mubr.f32.mxu0 0.0
    %287 = vmatmul.mubr.f32.gmra.mrb[0].mxu0 %v141
    %v288 = vpop.f32.mrb[0].mxu0
    %v289 = vadd.f32 %v91, %v288
    %v290 = vpop.f32.mrb[0].mxu0
    %291 = vdwg.mxu0
    %vm292 = vcmask 523264
    %v293 = vsel %vm292, %v214, 0.0
    %294 = vadd.xlane.f32.xlu0 %v293
    %v295 = vpop.xlane.xlu0 %294
    %v296 = vsel %vm292, %v219, 0.0
    %297 = vadd.xlane.f32.xlu0 %v296
    %v298 = vpop.xlane.xlu0 %297
    %v299 = vsel %vm292, %v224, 0.0
    %300 = vadd.xlane.f32.xlu0 %v299
    %v301 = vpop.xlane.xlu0 %300
    %v302 = vsel %vm292, %v229, 0.0
    %303 = vadd.xlane.f32.xlu0 %v302
    %v304 = vpop.xlane.xlu0 %303
    %v305 = vsel %vm292, %v234, 0.0
    %306 = vadd.xlane.f32.xlu0 %v305
    %v307 = vpop.xlane.xlu0 %306
    %v308 = vsel %vm292, %v239, 0.0
    %309 = vadd.xlane.f32.xlu0 %v308
    %v310 = vpop.xlane.xlu0 %309
    %v311 = vsel %vm292, %v244, 0.0
    %312 = vadd.xlane.f32.xlu0 %v311
    %v313 = vpop.xlane.xlu0 %312
    %v314 = vsel %vm292, %v249, 0.0
    %315 = vadd.xlane.f32.xlu0 %v314
    %v316 = vpop.xlane.xlu0 %315
    %v317 = vsel %vm292, %v254, 0.0
    %318 = vadd.xlane.f32.xlu0 %v317
    %v319 = vpop.xlane.xlu0 %318
    %v320 = vsel %vm292, %v259, 0.0
    %321 = vadd.xlane.f32.xlu0 %v320
    %v322 = vpop.xlane.xlu0 %321
    %v323 = vsel %vm292, %v264, 0.0
    %324 = vadd.xlane.f32.xlu0 %v323
    %v325 = vpop.xlane.xlu0 %324
    %v326 = vsel %vm292, %v269, 0.0
    %327 = vadd.xlane.f32.xlu0 %v326
    %v328 = vpop.xlane.xlu0 %327
    %v329 = vsel %vm292, %v274, 0.0
    %330 = vadd.xlane.f32.xlu0 %v329
    %v331 = vpop.xlane.xlu0 %330
    %v332 = vsel %vm292, %v279, 0.0
    %333 = vadd.xlane.f32.xlu0 %v332
    %v334 = vpop.xlane.xlu0 %333
    %v335 = vsel %vm292, %v284, 0.0
    %336 = vadd.xlane.f32.xlu0 %v335
    %v337 = vpop.xlane.xlu0 %336
    %v338 = vsel %vm292, %v289, 0.0
    %339 = vadd.xlane.f32.xlu0 %v338
    %v340 = vpop.xlane.xlu0 %339
    %v341 = vrcp.pop 64.0
    %v342 = vmul.f32 %v295, %v341
    %v343 = vmul.f32 %v298, %v341
    %v344 = vmul.f32 %v301, %v341
    %v345 = vmul.f32 %v304, %v341
    %v346 = vmul.f32 %v307, %v341
    %v347 = vmul.f32 %v310, %v341
    %v348 = vmul.f32 %v313, %v341
    %v349 = vmul.f32 %v316, %v341
    %v350 = vmul.f32 %v319, %v341
    %v351 = vmul.f32 %v322, %v341
    %v352 = vmul.f32 %v325, %v341
    %v353 = vmul.f32 %v328, %v341
    %v354 = vmul.f32 %v331, %v341
    %v355 = vmul.f32 %v334, %v341
    %v356 = vmul.f32 %v337, %v341
    %v357 = vmul.f32 %v340, %v341
    %v358 = vmul.f32 %v214, %v214
    %v359 = vmul.f32 %v219, %v219
    %v360 = vmul.f32 %v224, %v224
    %v361 = vmul.f32 %v229, %v229
    %v362 = vmul.f32 %v234, %v234
    %v363 = vmul.f32 %v239, %v239
    %v364 = vmul.f32 %v244, %v244
    %v365 = vmul.f32 %v249, %v249
    %v366 = vmul.f32 %v254, %v254
    %v367 = vmul.f32 %v259, %v259
    %v368 = vmul.f32 %v264, %v264
    %v369 = vmul.f32 %v269, %v269
    %v370 = vmul.f32 %v274, %v274
    %v371 = vmul.f32 %v279, %v279
    %v372 = vmul.f32 %v284, %v284
    %v373 = vmul.f32 %v289, %v289
    %v374 = vsel %vm292, %v358, 0.0
    %375 = vadd.xlane.f32.xlu0 %v374
    %v376 = vpop.xlane.xlu0 %375
    %v377 = vsel %vm292, %v359, 0.0
    %378 = vadd.xlane.f32.xlu0 %v377
    %v379 = vpop.xlane.xlu0 %378
    %v380 = vsel %vm292, %v360, 0.0
    %381 = vadd.xlane.f32.xlu0 %v380
    %v382 = vpop.xlane.xlu0 %381
    %v383 = vsel %vm292, %v361, 0.0
    %384 = vadd.xlane.f32.xlu0 %v383
    %v385 = vpop.xlane.xlu0 %384
    %v386 = vsel %vm292, %v362, 0.0
    %387 = vadd.xlane.f32.xlu0 %v386
    %v388 = vpop.xlane.xlu0 %387
    %v389 = vsel %vm292, %v363, 0.0
    %390 = vadd.xlane.f32.xlu0 %v389
    %v391 = vpop.xlane.xlu0 %390
    %v392 = vsel %vm292, %v364, 0.0
    %393 = vadd.xlane.f32.xlu0 %v392
    %v394 = vpop.xlane.xlu0 %393
    %v395 = vsel %vm292, %v365, 0.0
    %396 = vadd.xlane.f32.xlu0 %v395
    %v397 = vpop.xlane.xlu0 %396
    %v398 = vsel %vm292, %v366, 0.0
    %399 = vadd.xlane.f32.xlu0 %v398
    %v400 = vpop.xlane.xlu0 %399
    %v401 = vsel %vm292, %v367, 0.0
    %402 = vadd.xlane.f32.xlu0 %v401
    %v403 = vpop.xlane.xlu0 %402
    %v404 = vsel %vm292, %v368, 0.0
    %405 = vadd.xlane.f32.xlu0 %v404
    %v406 = vpop.xlane.xlu0 %405
    %v407 = vsel %vm292, %v369, 0.0
    %408 = vadd.xlane.f32.xlu0 %v407
    %v409 = vpop.xlane.xlu0 %408
    %v410 = vsel %vm292, %v370, 0.0
    %411 = vadd.xlane.f32.xlu0 %v410
    %v412 = vpop.xlane.xlu0 %411
    %v413 = vsel %vm292, %v371, 0.0
    %414 = vadd.xlane.f32.xlu0 %v413
    %v415 = vpop.xlane.xlu0 %414
    %v416 = vsel %vm292, %v372, 0.0
    %417 = vadd.xlane.f32.xlu0 %v416
    %v418 = vpop.xlane.xlu0 %417
    %v419 = vsel %vm292, %v373, 0.0
    %420 = vadd.xlane.f32.xlu0 %v419
    %v421 = vpop.xlane.xlu0 %420
    %v422 = vmul.f32 %v376, %v341
    %v423 = vmul.f32 %v379, %v341
    %v424 = vmul.f32 %v382, %v341
    %v425 = vmul.f32 %v385, %v341
    %v426 = vmul.f32 %v388, %v341
    %v427 = vmul.f32 %v391, %v341
    %v428 = vmul.f32 %v394, %v341
    %v429 = vmul.f32 %v397, %v341
    %v430 = vmul.f32 %v400, %v341
    %v431 = vmul.f32 %v403, %v341
    %v432 = vmul.f32 %v406, %v341
    %v433 = vmul.f32 %v409, %v341
    %v434 = vmul.f32 %v412, %v341
    %v435 = vmul.f32 %v415, %v341
    %v436 = vmul.f32 %v418, %v341
    %v437 = vmul.f32 %v421, %v341
    %v438 = vmul.f32 %v342, %v342
    %v439 = vmul.f32 %v343, %v343
    %v440 = vmul.f32 %v344, %v344
    %v441 = vmul.f32 %v345, %v345
    %v442 = vmul.f32 %v346, %v346
    %v443 = vmul.f32 %v347, %v347
    %v444 = vmul.f32 %v348, %v348
    %v445 = vmul.f32 %v349, %v349
    %v446 = vmul.f32 %v350, %v350
    %v447 = vmul.f32 %v351, %v351
    %v448 = vmul.f32 %v352, %v352
    %v449 = vmul.f32 %v353, %v353
    %v450 = vmul.f32 %v354, %v354
    %v451 = vmul.f32 %v355, %v355
    %v452 = vmul.f32 %v356, %v356
    %v453 = vmul.f32 %v357, %v357
    %v454 = vsub.f32 %v422, %v438
    %v455 = vsub.f32 %v423, %v439
    %v456 = vsub.f32 %v424, %v440
    %v457 = vsub.f32 %v425, %v441
    %v458 = vsub.f32 %v426, %v442
    %v459 = vsub.f32 %v427, %v443
    %v460 = vsub.f32 %v428, %v444
    %v461 = vsub.f32 %v429, %v445
    %v462 = vsub.f32 %v430, %v446
    %v463 = vsub.f32 %v431, %v447
    %v464 = vsub.f32 %v432, %v448
    %v465 = vsub.f32 %v433, %v449
    %v466 = vsub.f32 %v434, %v450
    %v467 = vsub.f32 %v435, %v451
    %v468 = vsub.f32 %v436, %v452
    %v469 = vsub.f32 %v437, %v453
    %v470 = vmax.f32 %v454, 0.0
    %v471 = vmax.f32 %v455, 0.0
    %v472 = vmax.f32 %v456, 0.0
    %v473 = vmax.f32 %v457, 0.0
    %v474 = vmax.f32 %v458, 0.0
    %v475 = vmax.f32 %v459, 0.0
    %v476 = vmax.f32 %v460, 0.0
    %v477 = vmax.f32 %v461, 0.0
    %v478 = vmax.f32 %v462, 0.0
    %v479 = vmax.f32 %v463, 0.0
    %v480 = vmax.f32 %v464, 0.0
    %v481 = vmax.f32 %v465, 0.0
    %v482 = vmax.f32 %v466, 0.0
    %v483 = vmax.f32 %v467, 0.0
    %v484 = vmax.f32 %v468, 0.0
    %v485 = vmax.f32 %v469, 0.0
    %v486 = vsub.f32 %v214, %v342
    %v487 = vsub.f32 %v219, %v343
    %v488 = vsub.f32 %v224, %v344
    %v489 = vsub.f32 %v229, %v345
    %v490 = vsub.f32 %v234, %v346
    %v491 = vsub.f32 %v239, %v347
    %v492 = vsub.f32 %v244, %v348
    %v493 = vsub.f32 %v249, %v349
    %v494 = vsub.f32 %v254, %v350
    %v495 = vsub.f32 %v259, %v351
    %v496 = vsub.f32 %v264, %v352
    %v497 = vsub.f32 %v269, %v353
    %v498 = vsub.f32 %v274, %v354
    %v499 = vsub.f32 %v279, %v355
    %v500 = vsub.f32 %v284, %v356
    %v501 = vsub.f32 %v289, %v357
    %v502 = vadd.f32 %v470, 1e-05
    %v503 = vadd.f32 %v471, 1e-05
    %v504 = vadd.f32 %v472, 1e-05
    %v505 = vadd.f32 %v473, 1e-05
    %v506 = vadd.f32 %v474, 1e-05
    %v507 = vadd.f32 %v475, 1e-05
    %v508 = vadd.f32 %v476, 1e-05
    %v509 = vadd.f32 %v477, 1e-05
    %v510 = vadd.f32 %v478, 1e-05
    %v511 = vadd.f32 %v479, 1e-05
    %v512 = vadd.f32 %v480, 1e-05
    %v513 = vadd.f32 %v481, 1e-05
    %v514 = vadd.f32 %v482, 1e-05
    %v515 = vadd.f32 %v483, 1e-05
    %v516 = vadd.f32 %v484, 1e-05
    %v517 = vadd.f32 %v485, 1e-05
    %v518 = vrsqrt.pop %v502
    %v519 = vrsqrt.pop %v503
    %v520 = vrsqrt.pop %v504
    %v521 = vrsqrt.pop %v505
    %v522 = vrsqrt.pop %v506
    %v523 = vrsqrt.pop %v507
    %v524 = vrsqrt.pop %v508
    %v525 = vrsqrt.pop %v509
    %v526 = vrsqrt.pop %v510
    %v527 = vrsqrt.pop %v511
    %v528 = vrsqrt.pop %v512
    %v529 = vrsqrt.pop %v513
    %v530 = vrsqrt.pop %v514
    %v531 = vrsqrt.pop %v515
    %v532 = vrsqrt.pop %v516
    %v533 = vrsqrt.pop %v517
    %v534 = vmul.f32 %v486, %v518
    %v535 = vmul.f32 %v487, %v519
    %v536 = vmul.f32 %v488, %v520
    %v537 = vmul.f32 %v489, %v521
    %v538 = vmul.f32 %v490, %v522
    %v539 = vmul.f32 %v491, %v523
    %v540 = vmul.f32 %v492, %v524
    %v541 = vmul.f32 %v493, %v525
    %v542 = vmul.f32 %v494, %v526
    %v543 = vmul.f32 %v495, %v527
    %v544 = vmul.f32 %v496, %v528
    %v545 = vmul.f32 %v497, %v529
    %v546 = vmul.f32 %v498, %v530
    %v547 = vmul.f32 %v499, %v531
    %v548 = vmul.f32 %v500, %v532
    %v549 = vmul.f32 %v501, %v533
    %v550 = vmul.f32 %v534, %v92
    %v551 = vmul.f32 %v535, %v92
    %v552 = vmul.f32 %v536, %v92
    %v553 = vmul.f32 %v537, %v92
    %v554 = vmul.f32 %v538, %v92
    %v555 = vmul.f32 %v539, %v92
    %v556 = vmul.f32 %v540, %v92
    %v557 = vmul.f32 %v541, %v92
    %v558 = vmul.f32 %v542, %v92
    %v559 = vmul.f32 %v543, %v92
    %v560 = vmul.f32 %v544, %v92
    %v561 = vmul.f32 %v545, %v92
    %v562 = vmul.f32 %v546, %v92
    %v563 = vmul.f32 %v547, %v92
    %v564 = vmul.f32 %v548, %v92
    %v565 = vmul.f32 %v549, %v92
    %v566 = vadd.f32 %v550, %v93
    %v567 = vadd.f32 %v551, %v93
    %v568 = vadd.f32 %v552, %v93
    %v569 = vadd.f32 %v553, %v93
    %v570 = vadd.f32 %v554, %v93
    %v571 = vadd.f32 %v555, %v93
    %v572 = vadd.f32 %v556, %v93
    %v573 = vadd.f32 %v557, %v93
    %v574 = vadd.f32 %v558, %v93
    %v575 = vadd.f32 %v559, %v93
    %v576 = vadd.f32 %v560, %v93
    %v577 = vadd.f32 %v561, %v93
    %v578 = vadd.f32 %v562, %v93
    %v579 = vadd.f32 %v563, %v93
    %v580 = vadd.f32 %v564, %v93
    %v581 = vadd.f32 %v565, %v93
    %v582 = vmax.f32 %v566, 0.0
    %v583 = vmax.f32 %v567, 0.0
    %v584 = vmax.f32 %v568, 0.0
    %v585 = vmax.f32 %v569, 0.0
    %v586 = vmax.f32 %v570, 0.0
    %v587 = vmax.f32 %v571, 0.0
    %v588 = vmax.f32 %v572, 0.0
    %v589 = vmax.f32 %v573, 0.0
    %v590 = vmax.f32 %v574, 0.0
    %v591 = vmax.f32 %v575, 0.0
    %v592 = vmax.f32 %v576, 0.0
    %v593 = vmax.f32 %v577, 0.0
    %v594 = vmax.f32 %v578, 0.0
    %v595 = vmax.f32 %v579, 0.0
    %v596 = vmax.f32 %v580, 0.0
    %v597 = vmax.f32 %v581, 0.0
    %v598 = vpack.c.bf16 %v583, %v582
    %v599 = vpack.c.bf16 %v585, %v584
    %v600 = vpack.c.bf16 %v587, %v586
    %v601 = vpack.c.bf16 %v589, %v588
    %v602 = vpack.c.bf16 %v591, %v590
    %v603 = vpack.c.bf16 %v593, %v592
    %v604 = vpack.c.bf16 %v595, %v594
    %v605 = vpack.c.bf16 %v597, %v596
    %v606 = vld [vmem:[#allocation8] sm:$0xf]
    %v607 = vld [vmem:[#allocation8 + $0x8] sm:$0xf]
    %v608 = vld [vmem:[#allocation8 + $0x10] sm:$0xf]
    %v609 = vld [vmem:[#allocation8 + $0x18] sm:$0xf]
    %v610 = vld [vmem:[#allocation8 + $0x20] sm:$0xf]
    %v611 = vld [vmem:[#allocation8 + $0x28] sm:$0xf]
    %v612 = vld [vmem:[#allocation8 + $0x30] sm:$0xf]
    %v613 = vld [vmem:[#allocation8 + $0x38] sm:$0xf]
    %v614 = vld [vmem:[#allocation7 + $0x11] ss:$0 sm:$0xff]
    %v615 = vld [vmem:[#allocation7 + $0x12] ss:$0 sm:$0xff]
    %v616 = vld [vmem:[#allocation7 + $0x13] ss:$0 sm:$0xff]
    %v625 = vunpack.c.l.b16 %v606
    %v626 = vunpack.c.l.b16 %v607
    %v627 = vunpack.c.l.b16 %v608
    %v628 = vunpack.c.l.b16 %v609
    %v629 = vunpack.c.l.b16 %v610
    %v630 = vunpack.c.l.b16 %v611
    %v631 = vunpack.c.l.b16 %v612
    %v632 = vunpack.c.l.b16 %v613
    %v633 = vpack.c.b16 %v626, %v625
    %v634 = vpack.c.b16 %v628, %v627
    %v635 = vpack.c.b16 %v630, %v629
    %v636 = vpack.c.b16 %v632, %v631
    %v642 = vsel %vm292, %v598, 0
    %v645 = vsel %vm292, %v599, 0
    %v648 = vsel %vm292, %v600, 0
    %v651 = vsel %vm292, %v601, 0
    %v654 = vsel %vm292, %v602, 0
    %v657 = vsel %vm292, %v603, 0
    %v660 = vsel %vm292, %v604, 0
    %v663 = vsel %vm292, %v605, 0
    %665 = vmatprep.subr.bf16.mxu0 0
    %666 = vmatpush1.bf16.msra.mxu0 %v633
    %667 = vmatprep.subr.bf16.mxu0 0
    %668 = vmatpush1.bf16.msra.mxu0 %v634
    %669 = vmatprep.subr.bf16.mxu0 0
    %670 = vmatpush1.bf16.msra.mxu0 %v635
    %671 = vmatprep.subr.bf16.mxu0 0
    %672 = vmatpush1.bf16.msra.mxu0 %v636
    %673 = vmatprep.subr.bf16.mxu0 0
    %674 = vmatpush1.bf16.msra.mxu0 0
    %675 = vmatprep.subr.bf16.mxu0 0
    %676 = vmatpush1.bf16.msra.mxu0 0
    %677 = vmatprep.subr.bf16.mxu0 0
    %678 = vmatpush1.bf16.msra.mxu0 0
    %679 = vmatprep.subr.bf16.mxu0 0
    %680 = vmatpush1.bf16.msra.mxu0 0
    %681 = vmatprep.subr.bf16.mxu0 0
    %682 = vmatpush1.bf16.msra.mxu0 0
    %683 = vmatprep.subr.bf16.mxu0 0
    %684 = vmatpush1.bf16.msra.mxu0 0
    %685 = vmatprep.subr.bf16.mxu0 0
    %686 = vmatpush1.bf16.msra.mxu0 0
    %687 = vmatprep.subr.bf16.mxu0 0
    %688 = vmatpush1.bf16.msra.mxu0 0
    %689 = vmatprep.subr.bf16.mxu0 0
    %690 = vmatpush1.bf16.msra.mxu0 0
    %691 = vmatprep.subr.bf16.mxu0 0
    %692 = vmatpush1.bf16.msra.mxu0 0
    %693 = vmatprep.subr.bf16.mxu0 0
    %694 = vmatpush1.bf16.msra.mxu0 0
    %695 = vmatprep.subr.bf16.mxu0 0
    %696 = vmatpush1.bf16.msra.mxu0 0
    %697 = vmatprep.mubr.bf16.mxu0 0
    %698 = vmatmul.mubr.bf16.gmra.mrb[0].mxu0 %v642
    %v699 = vpop.f32.mrb[0].mxu0
    %v700 = vadd.f32 %v614, %v699
    %v701 = vpop.f32.mrb[0].mxu0
    %v702 = vpop.f32.mrb[0].mxu0
    %v703 = vadd.f32 %v614, %v702
    %v704 = vpop.f32.mrb[0].mxu0
    %705 = vmatprep.mubr.bf16.mxu0 0
    %706 = vmatmul.mubr.bf16.gmra.mrb[0].mxu0 %v645
    %v707 = vpop.f32.mrb[0].mxu0
    %v708 = vadd.f32 %v614, %v707
    %v709 = vpop.f32.mrb[0].mxu0
    %v710 = vpop.f32.mrb[0].mxu0
    %v711 = vadd.f32 %v614, %v710
    %v712 = vpop.f32.mrb[0].mxu0
    %713 = vmatprep.mubr.bf16.mxu0 0
    %714 = vmatmul.mubr.bf16.gmra.mrb[0].mxu0 %v648
    %v715 = vpop.f32.mrb[0].mxu0
    %v716 = vadd.f32 %v614, %v715
    %v717 = vpop.f32.mrb[0].mxu0
    %v718 = vpop.f32.mrb[0].mxu0
    %v719 = vadd.f32 %v614, %v718
    %v720 = vpop.f32.mrb[0].mxu0
    %721 = vmatprep.mubr.bf16.mxu0 0
    %722 = vmatmul.mubr.bf16.gmra.mrb[0].mxu0 %v651
    %v723 = vpop.f32.mrb[0].mxu0
    %v724 = vadd.f32 %v614, %v723
    %v725 = vpop.f32.mrb[0].mxu0
    %v726 = vpop.f32.mrb[0].mxu0
    %v727 = vadd.f32 %v614, %v726
    %v728 = vpop.f32.mrb[0].mxu0
    %729 = vmatprep.mubr.bf16.mxu0 0
    %730 = vmatmul.mubr.bf16.gmra.mrb[0].mxu0 %v654
    %v731 = vpop.f32.mrb[0].mxu0
    %v732 = vadd.f32 %v614, %v731
    %v733 = vpop.f32.mrb[0].mxu0
    %v734 = vpop.f32.mrb[0].mxu0
    %v735 = vadd.f32 %v614, %v734
    %v736 = vpop.f32.mrb[0].mxu0
    %737 = vmatprep.mubr.bf16.mxu0 0
    %738 = vmatmul.mubr.bf16.gmra.mrb[0].mxu0 %v657
    %v739 = vpop.f32.mrb[0].mxu0
    %v740 = vadd.f32 %v614, %v739
    %v741 = vpop.f32.mrb[0].mxu0
    %v742 = vpop.f32.mrb[0].mxu0
    %v743 = vadd.f32 %v614, %v742
    %v744 = vpop.f32.mrb[0].mxu0
    %745 = vmatprep.mubr.bf16.mxu0 0
    %746 = vmatmul.mubr.bf16.gmra.mrb[0].mxu0 %v660
    %v747 = vpop.f32.mrb[0].mxu0
    %v748 = vadd.f32 %v614, %v747
    %v749 = vpop.f32.mrb[0].mxu0
    %v750 = vpop.f32.mrb[0].mxu0
    %v751 = vadd.f32 %v614, %v750
    %v752 = vpop.f32.mrb[0].mxu0
    %753 = vmatprep.mubr.bf16.mxu0 0
    %754 = vmatmul.mubr.bf16.gmra.mrb[0].mxu0 %v663
    %v755 = vpop.f32.mrb[0].mxu0
    %v756 = vadd.f32 %v614, %v755
    %v757 = vpop.f32.mrb[0].mxu0
    %v758 = vpop.f32.mrb[0].mxu0
    %v759 = vadd.f32 %v614, %v758
    %v760 = vpop.f32.mrb[0].mxu0
    %761 = vdwg.mxu0
    %v762 = vsel %vm292, %v700, 0.0
    %763 = vadd.xlane.f32.xlu0 %v762
    %v764 = vpop.xlane.xlu0 %763
    %v765 = vsel %vm292, %v703, 0.0
    %766 = vadd.xlane.f32.xlu0 %v765
    %v767 = vpop.xlane.xlu0 %766
    %v768 = vsel %vm292, %v708, 0.0
    %769 = vadd.xlane.f32.xlu0 %v768
    %v770 = vpop.xlane.xlu0 %769
    %v771 = vsel %vm292, %v711, 0.0
    %772 = vadd.xlane.f32.xlu0 %v771
    %v773 = vpop.xlane.xlu0 %772
    %v774 = vsel %vm292, %v716, 0.0
    %775 = vadd.xlane.f32.xlu0 %v774
    %v776 = vpop.xlane.xlu0 %775
    %v777 = vsel %vm292, %v719, 0.0
    %778 = vadd.xlane.f32.xlu0 %v777
    %v779 = vpop.xlane.xlu0 %778
    %v780 = vsel %vm292, %v724, 0.0
    %781 = vadd.xlane.f32.xlu0 %v780
    %v782 = vpop.xlane.xlu0 %781
    %v783 = vsel %vm292, %v727, 0.0
    %784 = vadd.xlane.f32.xlu0 %v783
    %v785 = vpop.xlane.xlu0 %784
    %v786 = vsel %vm292, %v732, 0.0
    %787 = vadd.xlane.f32.xlu0 %v786
    %v788 = vpop.xlane.xlu0 %787
    %v789 = vsel %vm292, %v735, 0.0
    %790 = vadd.xlane.f32.xlu0 %v789
    %v791 = vpop.xlane.xlu0 %790
    %v792 = vsel %vm292, %v740, 0.0
    %793 = vadd.xlane.f32.xlu0 %v792
    %v794 = vpop.xlane.xlu0 %793
    %v795 = vsel %vm292, %v743, 0.0
    %796 = vadd.xlane.f32.xlu0 %v795
    %v797 = vpop.xlane.xlu0 %796
    %v798 = vsel %vm292, %v748, 0.0
    %799 = vadd.xlane.f32.xlu0 %v798
    %v800 = vpop.xlane.xlu0 %799
    %v801 = vsel %vm292, %v751, 0.0
    %802 = vadd.xlane.f32.xlu0 %v801
    %v803 = vpop.xlane.xlu0 %802
    %v804 = vsel %vm292, %v756, 0.0
    %805 = vadd.xlane.f32.xlu0 %v804
    %v806 = vpop.xlane.xlu0 %805
    %v807 = vsel %vm292, %v759, 0.0
    %808 = vadd.xlane.f32.xlu0 %v807
    %v809 = vpop.xlane.xlu0 %808
    %v810 = vmul.f32 %v764, %v341
    %v811 = vmul.f32 %v767, %v341
    %v812 = vmul.f32 %v770, %v341
    %v813 = vmul.f32 %v773, %v341
    %v814 = vmul.f32 %v776, %v341
    %v815 = vmul.f32 %v779, %v341
    %v816 = vmul.f32 %v782, %v341
    %v817 = vmul.f32 %v785, %v341
    %v818 = vmul.f32 %v788, %v341
    %v819 = vmul.f32 %v791, %v341
    %v820 = vmul.f32 %v794, %v341
    %v821 = vmul.f32 %v797, %v341
    %v822 = vmul.f32 %v800, %v341
    %v823 = vmul.f32 %v803, %v341
    %v824 = vmul.f32 %v806, %v341
    %v825 = vmul.f32 %v809, %v341
    %v826 = vmul.f32 %v700, %v700
    %v827 = vmul.f32 %v703, %v703
    %v828 = vmul.f32 %v708, %v708
    %v829 = vmul.f32 %v711, %v711
    %v830 = vmul.f32 %v716, %v716
    %v831 = vmul.f32 %v719, %v719
    %v832 = vmul.f32 %v724, %v724
    %v833 = vmul.f32 %v727, %v727
    %v834 = vmul.f32 %v732, %v732
    %v835 = vmul.f32 %v735, %v735
    %v836 = vmul.f32 %v740, %v740
    %v837 = vmul.f32 %v743, %v743
    %v838 = vmul.f32 %v748, %v748
    %v839 = vmul.f32 %v751, %v751
    %v840 = vmul.f32 %v756, %v756
    %v841 = vmul.f32 %v759, %v759
    %v842 = vsel %vm292, %v826, 0.0
    %843 = vadd.xlane.f32.xlu0 %v842
    %v844 = vpop.xlane.xlu0 %843
    %v845 = vsel %vm292, %v827, 0.0
    %846 = vadd.xlane.f32.xlu0 %v845
    %v847 = vpop.xlane.xlu0 %846
    %v848 = vsel %vm292, %v828, 0.0
    %849 = vadd.xlane.f32.xlu0 %v848
    %v850 = vpop.xlane.xlu0 %849
    %v851 = vsel %vm292, %v829, 0.0
    %852 = vadd.xlane.f32.xlu0 %v851
    %v853 = vpop.xlane.xlu0 %852
    %v854 = vsel %vm292, %v830, 0.0
    %855 = vadd.xlane.f32.xlu0 %v854
    %v856 = vpop.xlane.xlu0 %855
    %v857 = vsel %vm292, %v831, 0.0
    %858 = vadd.xlane.f32.xlu0 %v857
    %v859 = vpop.xlane.xlu0 %858
    %v860 = vsel %vm292, %v832, 0.0
    %861 = vadd.xlane.f32.xlu0 %v860
    %v862 = vpop.xlane.xlu0 %861
    %v863 = vsel %vm292, %v833, 0.0
    %864 = vadd.xlane.f32.xlu0 %v863
    %v865 = vpop.xlane.xlu0 %864
    %v866 = vsel %vm292, %v834, 0.0
    %867 = vadd.xlane.f32.xlu0 %v866
    %v868 = vpop.xlane.xlu0 %867
    %v869 = vsel %vm292, %v835, 0.0
    %870 = vadd.xlane.f32.xlu0 %v869
    %v871 = vpop.xlane.xlu0 %870
    %v872 = vsel %vm292, %v836, 0.0
    %873 = vadd.xlane.f32.xlu0 %v872
    %v874 = vpop.xlane.xlu0 %873
    %v875 = vsel %vm292, %v837, 0.0
    %876 = vadd.xlane.f32.xlu0 %v875
    %v877 = vpop.xlane.xlu0 %876
    %v878 = vsel %vm292, %v838, 0.0
    %879 = vadd.xlane.f32.xlu0 %v878
    %v880 = vpop.xlane.xlu0 %879
    %v881 = vsel %vm292, %v839, 0.0
    %882 = vadd.xlane.f32.xlu0 %v881
    %v883 = vpop.xlane.xlu0 %882
    %v884 = vsel %vm292, %v840, 0.0
    %885 = vadd.xlane.f32.xlu0 %v884
    %v886 = vpop.xlane.xlu0 %885
    %v887 = vsel %vm292, %v841, 0.0
    %888 = vadd.xlane.f32.xlu0 %v887
    %v889 = vpop.xlane.xlu0 %888
    %v890 = vmul.f32 %v844, %v341
    %v891 = vmul.f32 %v847, %v341
    %v892 = vmul.f32 %v850, %v341
    %v893 = vmul.f32 %v853, %v341
    %v894 = vmul.f32 %v856, %v341
    %v895 = vmul.f32 %v859, %v341
    %v896 = vmul.f32 %v862, %v341
    %v897 = vmul.f32 %v865, %v341
    %v898 = vmul.f32 %v868, %v341
    %v899 = vmul.f32 %v871, %v341
    %v900 = vmul.f32 %v874, %v341
    %v901 = vmul.f32 %v877, %v341
    %v902 = vmul.f32 %v880, %v341
    %v903 = vmul.f32 %v883, %v341
    %v904 = vmul.f32 %v886, %v341
    %v905 = vmul.f32 %v889, %v341
    %v906 = vmul.f32 %v810, %v810
    %v907 = vmul.f32 %v811, %v811
    %v908 = vmul.f32 %v812, %v812
    %v909 = vmul.f32 %v813, %v813
    %v910 = vmul.f32 %v814, %v814
    %v911 = vmul.f32 %v815, %v815
    %v912 = vmul.f32 %v816, %v816
    %v913 = vmul.f32 %v817, %v817
    %v914 = vmul.f32 %v818, %v818
    %v915 = vmul.f32 %v819, %v819
    %v916 = vmul.f32 %v820, %v820
    %v917 = vmul.f32 %v821, %v821
    %v918 = vmul.f32 %v822, %v822
    %v919 = vmul.f32 %v823, %v823
    %v920 = vmul.f32 %v824, %v824
    %v921 = vmul.f32 %v825, %v825
    %v922 = vsub.f32 %v890, %v906
    %v923 = vsub.f32 %v891, %v907
    %v924 = vsub.f32 %v892, %v908
    %v925 = vsub.f32 %v893, %v909
    %v926 = vsub.f32 %v894, %v910
    %v927 = vsub.f32 %v895, %v911
    %v928 = vsub.f32 %v896, %v912
    %v929 = vsub.f32 %v897, %v913
    %v930 = vsub.f32 %v898, %v914
    %v931 = vsub.f32 %v899, %v915
    %v932 = vsub.f32 %v900, %v916
    %v933 = vsub.f32 %v901, %v917
    %v934 = vsub.f32 %v902, %v918
    %v935 = vsub.f32 %v903, %v919
    %v936 = vsub.f32 %v904, %v920
    %v937 = vsub.f32 %v905, %v921
    %v938 = vmax.f32 %v922, 0.0
    %v939 = vmax.f32 %v923, 0.0
    %v940 = vmax.f32 %v924, 0.0
    %v941 = vmax.f32 %v925, 0.0
    %v942 = vmax.f32 %v926, 0.0
    %v943 = vmax.f32 %v927, 0.0
    %v944 = vmax.f32 %v928, 0.0
    %v945 = vmax.f32 %v929, 0.0
    %v946 = vmax.f32 %v930, 0.0
    %v947 = vmax.f32 %v931, 0.0
    %v948 = vmax.f32 %v932, 0.0
    %v949 = vmax.f32 %v933, 0.0
    %v950 = vmax.f32 %v934, 0.0
    %v951 = vmax.f32 %v935, 0.0
    %v952 = vmax.f32 %v936, 0.0
    %v953 = vmax.f32 %v937, 0.0
    %v954 = vsub.f32 %v700, %v810
    %v955 = vsub.f32 %v703, %v811
    %v956 = vsub.f32 %v708, %v812
    %v957 = vsub.f32 %v711, %v813
    %v958 = vsub.f32 %v716, %v814
    %v959 = vsub.f32 %v719, %v815
    %v960 = vsub.f32 %v724, %v816
    %v961 = vsub.f32 %v727, %v817
    %v962 = vsub.f32 %v732, %v818
    %v963 = vsub.f32 %v735, %v819
    %v964 = vsub.f32 %v740, %v820
    %v965 = vsub.f32 %v743, %v821
    %v966 = vsub.f32 %v748, %v822
    %v967 = vsub.f32 %v751, %v823
    %v968 = vsub.f32 %v756, %v824
    %v969 = vsub.f32 %v759, %v825
    %v970 = vadd.f32 %v938, 1e-05
    %v971 = vadd.f32 %v939, 1e-05
    %v972 = vadd.f32 %v940, 1e-05
    %v973 = vadd.f32 %v941, 1e-05
    %v974 = vadd.f32 %v942, 1e-05
    %v975 = vadd.f32 %v943, 1e-05
    %v976 = vadd.f32 %v944, 1e-05
    %v977 = vadd.f32 %v945, 1e-05
    %v978 = vadd.f32 %v946, 1e-05
    %v979 = vadd.f32 %v947, 1e-05
    %v980 = vadd.f32 %v948, 1e-05
    %v981 = vadd.f32 %v949, 1e-05
    %v982 = vadd.f32 %v950, 1e-05
    %v983 = vadd.f32 %v951, 1e-05
    %v984 = vadd.f32 %v952, 1e-05
    %v985 = vadd.f32 %v953, 1e-05
    %v986 = vrsqrt.pop %v970
    %v987 = vrsqrt.pop %v971
    %v988 = vrsqrt.pop %v972
    %v989 = vrsqrt.pop %v973
    %v990 = vrsqrt.pop %v974
    %v991 = vrsqrt.pop %v975
    %v992 = vrsqrt.pop %v976
    %v993 = vrsqrt.pop %v977
    %v994 = vrsqrt.pop %v978
    %v995 = vrsqrt.pop %v979
    %v996 = vrsqrt.pop %v980
    %v997 = vrsqrt.pop %v981
    %v998 = vrsqrt.pop %v982
    %v999 = vrsqrt.pop %v983
    %v1000 = vrsqrt.pop %v984
    %v1001 = vrsqrt.pop %v985
    %v1002 = vmul.f32 %v954, %v986
    %v1003 = vmul.f32 %v955, %v987
    %v1004 = vmul.f32 %v956, %v988
    %v1005 = vmul.f32 %v957, %v989
    %v1006 = vmul.f32 %v958, %v990
    %v1007 = vmul.f32 %v959, %v991
    %v1008 = vmul.f32 %v960, %v992
    %v1009 = vmul.f32 %v961, %v993
    %v1010 = vmul.f32 %v962, %v994
    %v1011 = vmul.f32 %v963, %v995
    %v1012 = vmul.f32 %v964, %v996
    %v1013 = vmul.f32 %v965, %v997
    %v1014 = vmul.f32 %v966, %v998
    %v1015 = vmul.f32 %v967, %v999
    %v1016 = vmul.f32 %v968, %v1000
    %v1017 = vmul.f32 %v969, %v1001
    %v1018 = vmul.f32 %v1002, %v615
    %v1019 = vmul.f32 %v1003, %v615
    %v1020 = vmul.f32 %v1004, %v615
    %v1021 = vmul.f32 %v1005, %v615
    %v1022 = vmul.f32 %v1006, %v615
    %v1023 = vmul.f32 %v1007, %v615
    %v1024 = vmul.f32 %v1008, %v615
    %v1025 = vmul.f32 %v1009, %v615
    %v1026 = vmul.f32 %v1010, %v615
    %v1027 = vmul.f32 %v1011, %v615
    %v1028 = vmul.f32 %v1012, %v615
    %v1029 = vmul.f32 %v1013, %v615
    %v1030 = vmul.f32 %v1014, %v615
    %v1031 = vmul.f32 %v1015, %v615
    %v1032 = vmul.f32 %v1016, %v615
    %v1033 = vmul.f32 %v1017, %v615
    %v1034 = vadd.f32 %v1018, %v616
    %v1035 = vadd.f32 %v1019, %v616
    %v1036 = vadd.f32 %v1020, %v616
    %v1037 = vadd.f32 %v1021, %v616
    %v1038 = vadd.f32 %v1022, %v616
    %v1039 = vadd.f32 %v1023, %v616
    %v1040 = vadd.f32 %v1024, %v616
    %v1041 = vadd.f32 %v1025, %v616
    %v1042 = vadd.f32 %v1026, %v616
    %v1043 = vadd.f32 %v1027, %v616
    %v1044 = vadd.f32 %v1028, %v616
    %v1045 = vadd.f32 %v1029, %v616
    %v1046 = vadd.f32 %v1030, %v616
    %v1047 = vadd.f32 %v1031, %v616
    %v1048 = vadd.f32 %v1032, %v616
    %v1049 = vadd.f32 %v1033, %v616
    %v1050 = vmax.f32 %v1034, 0.0
    %v1051 = vmax.f32 %v1035, 0.0
    %v1052 = vmax.f32 %v1036, 0.0
    %v1053 = vmax.f32 %v1037, 0.0
    %v1054 = vmax.f32 %v1038, 0.0
    %v1055 = vmax.f32 %v1039, 0.0
    %v1056 = vmax.f32 %v1040, 0.0
    %v1057 = vmax.f32 %v1041, 0.0
    %v1058 = vmax.f32 %v1042, 0.0
    %v1059 = vmax.f32 %v1043, 0.0
    %v1060 = vmax.f32 %v1044, 0.0
    %v1061 = vmax.f32 %v1045, 0.0
    %v1062 = vmax.f32 %v1046, 0.0
    %v1063 = vmax.f32 %v1047, 0.0
    %v1064 = vmax.f32 %v1048, 0.0
    %v1065 = vmax.f32 %v1049, 0.0
    %v1066 = vpack.c.bf16 %v1051, %v1050
    %v1067 = vpack.c.bf16 %v1053, %v1052
    %v1068 = vpack.c.bf16 %v1055, %v1054
    %v1069 = vpack.c.bf16 %v1057, %v1056
    %v1070 = vpack.c.bf16 %v1059, %v1058
    %v1071 = vpack.c.bf16 %v1061, %v1060
    %v1072 = vpack.c.bf16 %v1063, %v1062
    %v1073 = vpack.c.bf16 %v1065, %v1064
    %v1074 = vld [vmem:[#allocation8 + $0x40] sm:$0xff]
    %v1075 = vld [vmem:[#allocation8 + $0x48] sm:$0xff]
    %v1076 = vld [vmem:[#allocation8 + $0x50] sm:$0xff]
    %v1077 = vld [vmem:[#allocation8 + $0x58] sm:$0xff]
    %v1078 = vld [vmem:[#allocation8 + $0x60] sm:$0xff]
    %v1079 = vld [vmem:[#allocation8 + $0x68] sm:$0xff]
    %v1080 = vld [vmem:[#allocation8 + $0x70] sm:$0xff]
    %v1081 = vld [vmem:[#allocation8 + $0x78] sm:$0xff]
    %s1082 = scalar_lea.vmem [#allocation7], 20
    %v1083 = vld [vmem:[%s1082] ss:$8 sm:$0x3]
    %s1084 = scalar_lea.vmem [#allocation7], 21
    %v1085 = vld [vmem:[%s1084] ss:$8 sm:$0x3]
    %s1086 = scalar_lea.vmem [#allocation7], 22
    %v1087 = vld [vmem:[%s1086] ss:$8 sm:$0x3]
    %v1089 = vlaneseq
    %v1090 = vshrl.u32 %v1089, 7
    %v1091 = vsub.s32 0, %v1090
    %v1092 = vrot.slane %v1083, %v1091
    %v1093 = vlaneseq
    %v1094 = vshrl.u32 %v1093, 7
    %v1095 = vsub.s32 1, %v1094
    %v1096 = vrot.slane %v1083, %v1095
    %v1107 = vunpack.c.l.b16 %v1074
    %v1108 = vunpack.c.h.b16 %v1074
    %v1109 = vunpack.c.l.b16 %v1075
    %v1110 = vunpack.c.h.b16 %v1075
    %v1111 = vunpack.c.l.b16 %v1076
    %v1112 = vunpack.c.h.b16 %v1076
    %v1113 = vunpack.c.l.b16 %v1077
    %v1114 = vunpack.c.h.b16 %v1077
    %v1115 = vunpack.c.l.b16 %v1078
    %v1116 = vunpack.c.h.b16 %v1078
    %v1117 = vunpack.c.l.b16 %v1079
    %v1118 = vunpack.c.h.b16 %v1079
    %v1119 = vunpack.c.l.b16 %v1080
    %v1120 = vunpack.c.h.b16 %v1080
    %v1121 = vunpack.c.l.b16 %v1081
    %v1122 = vunpack.c.h.b16 %v1081
    %v1123 = vpack.c.b16 %v1109, %v1107
    %v1124 = vpack.c.b16 %v1110, %v1108
    %v1125 = vpack.c.b16 %v1113, %v1111
    %v1126 = vpack.c.b16 %v1114, %v1112
    %v1127 = vpack.c.b16 %v1117, %v1115
    %v1128 = vpack.c.b16 %v1118, %v1116
    %v1129 = vpack.c.b16 %v1121, %v1119
    %v1130 = vpack.c.b16 %v1122, %v1120
    %v1140 = vsel %vm292, %v1066, 0
    %v1143 = vsel %vm292, %v1067, 0
    %v1146 = vsel %vm292, %v1068, 0
    %v1149 = vsel %vm292, %v1069, 0
    %v1152 = vsel %vm292, %v1070, 0
    %v1155 = vsel %vm292, %v1071, 0
    %v1158 = vsel %vm292, %v1072, 0
    %v1161 = vsel %vm292, %v1073, 0
    %1163 = vmatprep.subr.bf16.mxu0 %v1124
    %1164 = vmatpush1.bf16.msra.mxu0 %v1123
    %1165 = vmatprep.subr.bf16.mxu0 %v1126
    %1166 = vmatpush1.bf16.msra.mxu0 %v1125
    %1167 = vmatprep.subr.bf16.mxu0 %v1128
    %1168 = vmatpush1.bf16.msra.mxu0 %v1127
    %1169 = vmatprep.subr.bf16.mxu0 %v1130
    %1170 = vmatpush1.bf16.msra.mxu0 %v1129
    %1171 = vmatprep.subr.bf16.mxu0 0
    %1172 = vmatpush1.bf16.msra.mxu0 0
    %1173 = vmatprep.subr.bf16.mxu0 0
    %1174 = vmatpush1.bf16.msra.mxu0 0
    %1175 = vmatprep.subr.bf16.mxu0 0
    %1176 = vmatpush1.bf16.msra.mxu0 0
    %1177 = vmatprep.subr.bf16.mxu0 0
    %1178 = vmatpush1.bf16.msra.mxu0 0
    %1179 = vmatprep.subr.bf16.mxu0 0
    %1180 = vmatpush1.bf16.msra.mxu0 0
    %1181 = vmatprep.subr.bf16.mxu0 0
    %1182 = vmatpush1.bf16.msra.mxu0 0
    %1183 = vmatprep.subr.bf16.mxu0 0
    %1184 = vmatpush1.bf16.msra.mxu0 0
    %1185 = vmatprep.subr.bf16.mxu0 0
    %1186 = vmatpush1.bf16.msra.mxu0 0
    %1187 = vmatprep.subr.bf16.mxu0 0
    %1188 = vmatpush1.bf16.msra.mxu0 0
    %1189 = vmatprep.subr.bf16.mxu0 0
    %1190 = vmatpush1.bf16.msra.mxu0 0
    %1191 = vmatprep.subr.bf16.mxu0 0
    %1192 = vmatpush1.bf16.msra.mxu0 0
    %1193 = vmatprep.subr.bf16.mxu0 0
    %1194 = vmatpush1.bf16.msra.mxu0 0
    %1195 = vmatprep.mubr.bf16.mxu0 0
    %1196 = vmatmul.mubr.bf16.gmra.mrb[0].mxu0 %v1140
    %v1197 = vpop.f32.mrb[0].mxu0
    %v1198 = vadd.f32 %v1092, %v1197
    %v1199 = vpop.f32.mrb[0].mxu0
    %v1200 = vadd.f32 %v1096, %v1199
    %v1201 = vpop.f32.mrb[0].mxu0
    %v1202 = vadd.f32 %v1092, %v1201
    %v1203 = vpop.f32.mrb[0].mxu0
    %v1204 = vadd.f32 %v1096, %v1203
    %1205 = vmatprep.mubr.bf16.mxu0 0
    %1206 = vmatmul.mubr.bf16.gmra.mrb[0].mxu0 %v1143
    %v1207 = vpop.f32.mrb[0].mxu0
    %v1208 = vadd.f32 %v1092, %v1207
    %v1209 = vpop.f32.mrb[0].mxu0
    %v1210 = vadd.f32 %v1096, %v1209
    %v1211 = vpop.f32.mrb[0].mxu0
    %v1212 = vadd.f32 %v1092, %v1211
    %v1213 = vpop.f32.mrb[0].mxu0
    %v1214 = vadd.f32 %v1096, %v1213
    %1215 = vmatprep.mubr.bf16.mxu0 0
    %1216 = vmatmul.mubr.bf16.gmra.mrb[0].mxu0 %v1146
    %v1217 = vpop.f32.mrb[0].mxu0
    %v1218 = vadd.f32 %v1092, %v1217
    %v1219 = vpop.f32.mrb[0].mxu0
    %v1220 = vadd.f32 %v1096, %v1219
    %v1221 = vpop.f32.mrb[0].mxu0
    %v1222 = vadd.f32 %v1092, %v1221
    %v1223 = vpop.f32.mrb[0].mxu0
    %v1224 = vadd.f32 %v1096, %v1223
    %1225 = vmatprep.mubr.bf16.mxu0 0
    %1226 = vmatmul.mubr.bf16.gmra.mrb[0].mxu0 %v1149
    %v1227 = vpop.f32.mrb[0].mxu0
    %v1228 = vadd.f32 %v1092, %v1227
    %v1229 = vpop.f32.mrb[0].mxu0
    %v1230 = vadd.f32 %v1096, %v1229
    %v1231 = vpop.f32.mrb[0].mxu0
    %v1232 = vadd.f32 %v1092, %v1231
    %v1233 = vpop.f32.mrb[0].mxu0
    %v1234 = vadd.f32 %v1096, %v1233
    %1235 = vmatprep.mubr.bf16.mxu0 0
    %1236 = vmatmul.mubr.bf16.gmra.mrb[0].mxu0 %v1152
    %v1237 = vpop.f32.mrb[0].mxu0
    %v1238 = vadd.f32 %v1092, %v1237
    %v1239 = vpop.f32.mrb[0].mxu0
    %v1240 = vadd.f32 %v1096, %v1239
    %v1241 = vpop.f32.mrb[0].mxu0
    %v1242 = vadd.f32 %v1092, %v1241
    %v1243 = vpop.f32.mrb[0].mxu0
    %v1244 = vadd.f32 %v1096, %v1243
    %1245 = vmatprep.mubr.bf16.mxu0 0
    %1246 = vmatmul.mubr.bf16.gmra.mrb[0].mxu0 %v1155
    %v1247 = vpop.f32.mrb[0].mxu0
    %v1248 = vadd.f32 %v1092, %v1247
    %v1249 = vpop.f32.mrb[0].mxu0
    %v1250 = vadd.f32 %v1096, %v1249
    %v1251 = vpop.f32.mrb[0].mxu0
    %v1252 = vadd.f32 %v1092, %v1251
    %v1253 = vpop.f32.mrb[0].mxu0
    %v1254 = vadd.f32 %v1096, %v1253
    %1255 = vmatprep.mubr.bf16.mxu0 0
    %1256 = vmatmul.mubr.bf16.gmra.mrb[0].mxu0 %v1158
    %v1257 = vpop.f32.mrb[0].mxu0
    %v1258 = vadd.f32 %v1092, %v1257
    %v1259 = vpop.f32.mrb[0].mxu0
    %v1260 = vadd.f32 %v1096, %v1259
    %v1261 = vpop.f32.mrb[0].mxu0
    %v1262 = vadd.f32 %v1092, %v1261
    %v1263 = vpop.f32.mrb[0].mxu0
    %v1264 = vadd.f32 %v1096, %v1263
    %1265 = vmatprep.mubr.bf16.mxu0 0
    %1266 = vmatmul.mubr.bf16.gmra.mrb[0].mxu0 %v1161
    %v1267 = vpop.f32.mrb[0].mxu0
    %v1268 = vadd.f32 %v1092, %v1267
    %v1269 = vpop.f32.mrb[0].mxu0
    %v1270 = vadd.f32 %v1096, %v1269
    %v1271 = vpop.f32.mrb[0].mxu0
    %v1272 = vadd.f32 %v1092, %v1271
    %v1273 = vpop.f32.mrb[0].mxu0
    %v1274 = vadd.f32 %v1096, %v1273
    %1275 = vdwg.mxu0
    %v1276 = vadd.f32 %v1198, %v1200
    %1277 = vadd.xlane.f32.xlu0 %v1276
    %v1278 = vpop.xlane.xlu0 %1277
    %v1279 = vadd.f32 %v1202, %v1204
    %1280 = vadd.xlane.f32.xlu0 %v1279
    %v1281 = vpop.xlane.xlu0 %1280
    %v1282 = vadd.f32 %v1208, %v1210
    %1283 = vadd.xlane.f32.xlu0 %v1282
    %v1284 = vpop.xlane.xlu0 %1283
    %v1285 = vadd.f32 %v1212, %v1214
    %1286 = vadd.xlane.f32.xlu0 %v1285
    %v1287 = vpop.xlane.xlu0 %1286
    %v1288 = vadd.f32 %v1218, %v1220
    %1289 = vadd.xlane.f32.xlu0 %v1288
    %v1290 = vpop.xlane.xlu0 %1289
    %v1291 = vadd.f32 %v1222, %v1224
    %1292 = vadd.xlane.f32.xlu0 %v1291
    %v1293 = vpop.xlane.xlu0 %1292
    %v1294 = vadd.f32 %v1228, %v1230
    %1295 = vadd.xlane.f32.xlu0 %v1294
    %v1296 = vpop.xlane.xlu0 %1295
    %v1297 = vadd.f32 %v1232, %v1234
    %1298 = vadd.xlane.f32.xlu0 %v1297
    %v1299 = vpop.xlane.xlu0 %1298
    %v1300 = vadd.f32 %v1238, %v1240
    %1301 = vadd.xlane.f32.xlu0 %v1300
    %v1302 = vpop.xlane.xlu0 %1301
    %v1303 = vadd.f32 %v1242, %v1244
    %1304 = vadd.xlane.f32.xlu0 %v1303
    %v1305 = vpop.xlane.xlu0 %1304
    %v1306 = vadd.f32 %v1248, %v1250
    %1307 = vadd.xlane.f32.xlu0 %v1306
    %v1308 = vpop.xlane.xlu0 %1307
    %v1309 = vadd.f32 %v1252, %v1254
    %1310 = vadd.xlane.f32.xlu0 %v1309
    %v1311 = vpop.xlane.xlu0 %1310
    %v1312 = vadd.f32 %v1258, %v1260
    %1313 = vadd.xlane.f32.xlu0 %v1312
    %v1314 = vpop.xlane.xlu0 %1313
    %v1315 = vadd.f32 %v1262, %v1264
    %1316 = vadd.xlane.f32.xlu0 %v1315
    %v1317 = vpop.xlane.xlu0 %1316
    %v1318 = vadd.f32 %v1268, %v1270
    %1319 = vadd.xlane.f32.xlu0 %v1318
    %v1320 = vpop.xlane.xlu0 %1319
    %v1321 = vadd.f32 %v1272, %v1274
    %1322 = vadd.xlane.f32.xlu0 %v1321
    %v1323 = vpop.xlane.xlu0 %1322
    %v1324 = vrcp.pop 256.0
    %v1325 = vmul.f32 %v1278, %v1324
    %v1326 = vmul.f32 %v1281, %v1324
    %v1327 = vmul.f32 %v1284, %v1324
    %v1328 = vmul.f32 %v1287, %v1324
    %v1329 = vmul.f32 %v1290, %v1324
    %v1330 = vmul.f32 %v1293, %v1324
    %v1331 = vmul.f32 %v1296, %v1324
    %v1332 = vmul.f32 %v1299, %v1324
    %v1333 = vmul.f32 %v1302, %v1324
    %v1334 = vmul.f32 %v1305, %v1324
    %v1335 = vmul.f32 %v1308, %v1324
    %v1336 = vmul.f32 %v1311, %v1324
    %v1337 = vmul.f32 %v1314, %v1324
    %v1338 = vmul.f32 %v1317, %v1324
    %v1339 = vmul.f32 %v1320, %v1324
    %v1340 = vmul.f32 %v1323, %v1324
    %v1341 = vmul.f32 %v1198, %v1198
    %v1342 = vmul.f32 %v1200, %v1200
    %v1343 = vmul.f32 %v1202, %v1202
    %v1344 = vmul.f32 %v1204, %v1204
    %v1345 = vmul.f32 %v1208, %v1208
    %v1346 = vmul.f32 %v1210, %v1210
    %v1347 = vmul.f32 %v1212, %v1212
    %v1348 = vmul.f32 %v1214, %v1214
    %v1349 = vmul.f32 %v1218, %v1218
    %v1350 = vmul.f32 %v1220, %v1220
    %v1351 = vmul.f32 %v1222, %v1222
    %v1352 = vmul.f32 %v1224, %v1224
    %v1353 = vmul.f32 %v1228, %v1228
    %v1354 = vmul.f32 %v1230, %v1230
    %v1355 = vmul.f32 %v1232, %v1232
    %v1356 = vmul.f32 %v1234, %v1234
    %v1357 = vmul.f32 %v1238, %v1238
    %v1358 = vmul.f32 %v1240, %v1240
    %v1359 = vmul.f32 %v1242, %v1242
    %v1360 = vmul.f32 %v1244, %v1244
    %v1361 = vmul.f32 %v1248, %v1248
    %v1362 = vmul.f32 %v1250, %v1250
    %v1363 = vmul.f32 %v1252, %v1252
    %v1364 = vmul.f32 %v1254, %v1254
    %v1365 = vmul.f32 %v1258, %v1258
    %v1366 = vmul.f32 %v1260, %v1260
    %v1367 = vmul.f32 %v1262, %v1262
    %v1368 = vmul.f32 %v1264, %v1264
    %v1369 = vmul.f32 %v1268, %v1268
    %v1370 = vmul.f32 %v1270, %v1270
    %v1371 = vmul.f32 %v1272, %v1272
    %v1372 = vmul.f32 %v1274, %v1274
    %v1373 = vadd.f32 %v1341, %v1342
    %1374 = vadd.xlane.f32.xlu0 %v1373
    %v1375 = vpop.xlane.xlu0 %1374
    %v1376 = vadd.f32 %v1343, %v1344
    %1377 = vadd.xlane.f32.xlu0 %v1376
    %v1378 = vpop.xlane.xlu0 %1377
    %v1379 = vadd.f32 %v1345, %v1346
    %1380 = vadd.xlane.f32.xlu0 %v1379
    %v1381 = vpop.xlane.xlu0 %1380
    %v1382 = vadd.f32 %v1347, %v1348
    %1383 = vadd.xlane.f32.xlu0 %v1382
    %v1384 = vpop.xlane.xlu0 %1383
    %v1385 = vadd.f32 %v1349, %v1350
    %1386 = vadd.xlane.f32.xlu0 %v1385
    %v1387 = vpop.xlane.xlu0 %1386
    %v1388 = vadd.f32 %v1351, %v1352
    %1389 = vadd.xlane.f32.xlu0 %v1388
    %v1390 = vpop.xlane.xlu0 %1389
    %v1391 = vadd.f32 %v1353, %v1354
    %1392 = vadd.xlane.f32.xlu0 %v1391
    %v1393 = vpop.xlane.xlu0 %1392
    %v1394 = vadd.f32 %v1355, %v1356
    %1395 = vadd.xlane.f32.xlu0 %v1394
    %v1396 = vpop.xlane.xlu0 %1395
    %v1397 = vadd.f32 %v1357, %v1358
    %1398 = vadd.xlane.f32.xlu0 %v1397
    %v1399 = vpop.xlane.xlu0 %1398
    %v1400 = vadd.f32 %v1359, %v1360
    %1401 = vadd.xlane.f32.xlu0 %v1400
    %v1402 = vpop.xlane.xlu0 %1401
    %v1403 = vadd.f32 %v1361, %v1362
    %1404 = vadd.xlane.f32.xlu0 %v1403
    %v1405 = vpop.xlane.xlu0 %1404
    %v1406 = vadd.f32 %v1363, %v1364
    %1407 = vadd.xlane.f32.xlu0 %v1406
    %v1408 = vpop.xlane.xlu0 %1407
    %v1409 = vadd.f32 %v1365, %v1366
    %1410 = vadd.xlane.f32.xlu0 %v1409
    %v1411 = vpop.xlane.xlu0 %1410
    %v1412 = vadd.f32 %v1367, %v1368
    %1413 = vadd.xlane.f32.xlu0 %v1412
    %v1414 = vpop.xlane.xlu0 %1413
    %v1415 = vadd.f32 %v1369, %v1370
    %1416 = vadd.xlane.f32.xlu0 %v1415
    %v1417 = vpop.xlane.xlu0 %1416
    %v1418 = vadd.f32 %v1371, %v1372
    %1419 = vadd.xlane.f32.xlu0 %v1418
    %v1420 = vpop.xlane.xlu0 %1419
    %v1421 = vmul.f32 %v1375, %v1324
    %v1422 = vmul.f32 %v1378, %v1324
    %v1423 = vmul.f32 %v1381, %v1324
    %v1424 = vmul.f32 %v1384, %v1324
    %v1425 = vmul.f32 %v1387, %v1324
    %v1426 = vmul.f32 %v1390, %v1324
    %v1427 = vmul.f32 %v1393, %v1324
    %v1428 = vmul.f32 %v1396, %v1324
    %v1429 = vmul.f32 %v1399, %v1324
    %v1430 = vmul.f32 %v1402, %v1324
    %v1431 = vmul.f32 %v1405, %v1324
    %v1432 = vmul.f32 %v1408, %v1324
    %v1433 = vmul.f32 %v1411, %v1324
    %v1434 = vmul.f32 %v1414, %v1324
    %v1435 = vmul.f32 %v1417, %v1324
    %v1436 = vmul.f32 %v1420, %v1324
    %v1437 = vmul.f32 %v1325, %v1325
    %v1438 = vmul.f32 %v1326, %v1326
    %v1439 = vmul.f32 %v1327, %v1327
    %v1440 = vmul.f32 %v1328, %v1328
    %v1441 = vmul.f32 %v1329, %v1329
    %v1442 = vmul.f32 %v1330, %v1330
    %v1443 = vmul.f32 %v1331, %v1331
    %v1444 = vmul.f32 %v1332, %v1332
    %v1445 = vmul.f32 %v1333, %v1333
    %v1446 = vmul.f32 %v1334, %v1334
    %v1447 = vmul.f32 %v1335, %v1335
    %v1448 = vmul.f32 %v1336, %v1336
    %v1449 = vmul.f32 %v1337, %v1337
    %v1450 = vmul.f32 %v1338, %v1338
    %v1451 = vmul.f32 %v1339, %v1339
    %v1452 = vmul.f32 %v1340, %v1340
    %v1453 = vsub.f32 %v1421, %v1437
    %v1454 = vsub.f32 %v1422, %v1438
    %v1455 = vsub.f32 %v1423, %v1439
    %v1456 = vsub.f32 %v1424, %v1440
    %v1457 = vsub.f32 %v1425, %v1441
    %v1458 = vsub.f32 %v1426, %v1442
    %v1459 = vsub.f32 %v1427, %v1443
    %v1460 = vsub.f32 %v1428, %v1444
    %v1461 = vsub.f32 %v1429, %v1445
    %v1462 = vsub.f32 %v1430, %v1446
    %v1463 = vsub.f32 %v1431, %v1447
    %v1464 = vsub.f32 %v1432, %v1448
    %v1465 = vsub.f32 %v1433, %v1449
    %v1466 = vsub.f32 %v1434, %v1450
    %v1467 = vsub.f32 %v1435, %v1451
    %v1468 = vsub.f32 %v1436, %v1452
    %v1469 = vmax.f32 %v1453, 0.0
    %v1470 = vmax.f32 %v1454, 0.0
    %v1471 = vmax.f32 %v1455, 0.0
    %v1472 = vmax.f32 %v1456, 0.0
    %v1473 = vmax.f32 %v1457, 0.0
    %v1474 = vmax.f32 %v1458, 0.0
    %v1475 = vmax.f32 %v1459, 0.0
    %v1476 = vmax.f32 %v1460, 0.0
    %v1477 = vmax.f32 %v1461, 0.0
    %v1478 = vmax.f32 %v1462, 0.0
    %v1479 = vmax.f32 %v1463, 0.0
    %v1480 = vmax.f32 %v1464, 0.0
    %v1481 = vmax.f32 %v1465, 0.0
    %v1482 = vmax.f32 %v1466, 0.0
    %v1483 = vmax.f32 %v1467, 0.0
    %v1484 = vmax.f32 %v1468, 0.0
    %v1485 = vsub.f32 %v1198, %v1325
    %v1486 = vsub.f32 %v1200, %v1325
    %v1487 = vsub.f32 %v1202, %v1326
    %v1488 = vsub.f32 %v1204, %v1326
    %v1489 = vsub.f32 %v1208, %v1327
    %v1490 = vsub.f32 %v1210, %v1327
    %v1491 = vsub.f32 %v1212, %v1328
    %v1492 = vsub.f32 %v1214, %v1328
    %v1493 = vsub.f32 %v1218, %v1329
    %v1494 = vsub.f32 %v1220, %v1329
    %v1495 = vsub.f32 %v1222, %v1330
    %v1496 = vsub.f32 %v1224, %v1330
    %v1497 = vsub.f32 %v1228, %v1331
    %v1498 = vsub.f32 %v1230, %v1331
    %v1499 = vsub.f32 %v1232, %v1332
    %v1500 = vsub.f32 %v1234, %v1332
    %v1501 = vsub.f32 %v1238, %v1333
    %v1502 = vsub.f32 %v1240, %v1333
    %v1503 = vsub.f32 %v1242, %v1334
    %v1504 = vsub.f32 %v1244, %v1334
    %v1505 = vsub.f32 %v1248, %v1335
    %v1506 = vsub.f32 %v1250, %v1335
    %v1507 = vsub.f32 %v1252, %v1336
    %v1508 = vsub.f32 %v1254, %v1336
    %v1509 = vsub.f32 %v1258, %v1337
    %v1510 = vsub.f32 %v1260, %v1337
    %v1511 = vsub.f32 %v1262, %v1338
    %v1512 = vsub.f32 %v1264, %v1338
    %v1513 = vsub.f32 %v1268, %v1339
    %v1514 = vsub.f32 %v1270, %v1339
    %v1515 = vsub.f32 %v1272, %v1340
    %v1516 = vsub.f32 %v1274, %v1340
    %v1517 = vadd.f32 %v1469, 1e-05
    %v1518 = vadd.f32 %v1470, 1e-05
    %v1519 = vadd.f32 %v1471, 1e-05
    %v1520 = vadd.f32 %v1472, 1e-05
    %v1521 = vadd.f32 %v1473, 1e-05
    %v1522 = vadd.f32 %v1474, 1e-05
    %v1523 = vadd.f32 %v1475, 1e-05
    %v1524 = vadd.f32 %v1476, 1e-05
    %v1525 = vadd.f32 %v1477, 1e-05
    %v1526 = vadd.f32 %v1478, 1e-05
    %v1527 = vadd.f32 %v1479, 1e-05
    %v1528 = vadd.f32 %v1480, 1e-05
    %v1529 = vadd.f32 %v1481, 1e-05
    %v1530 = vadd.f32 %v1482, 1e-05
    %v1531 = vadd.f32 %v1483, 1e-05
    %v1532 = vadd.f32 %v1484, 1e-05
    %v1533 = vrsqrt.pop %v1517
    %v1534 = vrsqrt.pop %v1518
    %v1535 = vrsqrt.pop %v1519
    %v1536 = vrsqrt.pop %v1520
    %v1537 = vrsqrt.pop %v1521
    %v1538 = vrsqrt.pop %v1522
    %v1539 = vrsqrt.pop %v1523
    %v1540 = vrsqrt.pop %v1524
    %v1541 = vrsqrt.pop %v1525
    %v1542 = vrsqrt.pop %v1526
    %v1543 = vrsqrt.pop %v1527
    %v1544 = vrsqrt.pop %v1528
    %v1545 = vrsqrt.pop %v1529
    %v1546 = vrsqrt.pop %v1530
    %v1547 = vrsqrt.pop %v1531
    %v1548 = vrsqrt.pop %v1532
    %v1549 = vmul.f32 %v1485, %v1533
    %v1550 = vmul.f32 %v1486, %v1533
    %v1551 = vmul.f32 %v1487, %v1534
    %v1552 = vmul.f32 %v1488, %v1534
    %v1553 = vmul.f32 %v1489, %v1535
    %v1554 = vmul.f32 %v1490, %v1535
    %v1555 = vmul.f32 %v1491, %v1536
    %v1556 = vmul.f32 %v1492, %v1536
    %v1557 = vmul.f32 %v1493, %v1537
    %v1558 = vmul.f32 %v1494, %v1537
    %v1559 = vmul.f32 %v1495, %v1538
    %v1560 = vmul.f32 %v1496, %v1538
    %v1561 = vmul.f32 %v1497, %v1539
    %v1562 = vmul.f32 %v1498, %v1539
    %v1563 = vmul.f32 %v1499, %v1540
    %v1564 = vmul.f32 %v1500, %v1540
    %v1565 = vmul.f32 %v1501, %v1541
    %v1566 = vmul.f32 %v1502, %v1541
    %v1567 = vmul.f32 %v1503, %v1542
    %v1568 = vmul.f32 %v1504, %v1542
    %v1569 = vmul.f32 %v1505, %v1543
    %v1570 = vmul.f32 %v1506, %v1543
    %v1571 = vmul.f32 %v1507, %v1544
    %v1572 = vmul.f32 %v1508, %v1544
    %v1573 = vmul.f32 %v1509, %v1545
    %v1574 = vmul.f32 %v1510, %v1545
    %v1575 = vmul.f32 %v1511, %v1546
    %v1576 = vmul.f32 %v1512, %v1546
    %v1577 = vmul.f32 %v1513, %v1547
    %v1578 = vmul.f32 %v1514, %v1547
    %v1579 = vmul.f32 %v1515, %v1548
    %v1580 = vmul.f32 %v1516, %v1548
    %v1582 = vlaneseq
    %v1583 = vshrl.u32 %v1582, 7
    %v1584 = vsub.s32 0, %v1583
    %v1585 = vrot.slane %v1085, %v1584
    %v1586 = vlaneseq
    %v1587 = vshrl.u32 %v1586, 7
    %v1588 = vsub.s32 1, %v1587
    %v1589 = vrot.slane %v1085, %v1588
    %v1592 = vmul.f32 %v1549, %v1585
    %v1593 = vmul.f32 %v1550, %v1589
    %v1594 = vmul.f32 %v1551, %v1585
    %v1595 = vmul.f32 %v1552, %v1589
    %v1596 = vmul.f32 %v1553, %v1585
    %v1597 = vmul.f32 %v1554, %v1589
    %v1598 = vmul.f32 %v1555, %v1585
    %v1599 = vmul.f32 %v1556, %v1589
    %v1600 = vmul.f32 %v1557, %v1585
    %v1601 = vmul.f32 %v1558, %v1589
    %v1602 = vmul.f32 %v1559, %v1585
    %v1603 = vmul.f32 %v1560, %v1589
    %v1604 = vmul.f32 %v1561, %v1585
    %v1605 = vmul.f32 %v1562, %v1589
    %v1606 = vmul.f32 %v1563, %v1585
    %v1607 = vmul.f32 %v1564, %v1589
    %v1608 = vmul.f32 %v1565, %v1585
    %v1609 = vmul.f32 %v1566, %v1589
    %v1610 = vmul.f32 %v1567, %v1585
    %v1611 = vmul.f32 %v1568, %v1589
    %v1612 = vmul.f32 %v1569, %v1585
    %v1613 = vmul.f32 %v1570, %v1589
    %v1614 = vmul.f32 %v1571, %v1585
    %v1615 = vmul.f32 %v1572, %v1589
    %v1616 = vmul.f32 %v1573, %v1585
    %v1617 = vmul.f32 %v1574, %v1589
    %v1618 = vmul.f32 %v1575, %v1585
    %v1619 = vmul.f32 %v1576, %v1589
    %v1620 = vmul.f32 %v1577, %v1585
    %v1621 = vmul.f32 %v1578, %v1589
    %v1622 = vmul.f32 %v1579, %v1585
    %v1623 = vmul.f32 %v1580, %v1589
    %v1625 = vlaneseq
    %v1626 = vshrl.u32 %v1625, 7
    %v1627 = vsub.s32 0, %v1626
    %v1628 = vrot.slane %v1087, %v1627
    %v1629 = vlaneseq
    %v1630 = vshrl.u32 %v1629, 7
    %v1631 = vsub.s32 1, %v1630
    %v1632 = vrot.slane %v1087, %v1631
    %v1635 = vadd.f32 %v1592, %v1628
    %v1636 = vadd.f32 %v1593, %v1632
    %v1637 = vadd.f32 %v1594, %v1628
    %v1638 = vadd.f32 %v1595, %v1632
    %v1639 = vadd.f32 %v1596, %v1628
    %v1640 = vadd.f32 %v1597, %v1632
    %v1641 = vadd.f32 %v1598, %v1628
    %v1642 = vadd.f32 %v1599, %v1632
    %v1643 = vadd.f32 %v1600, %v1628
    %v1644 = vadd.f32 %v1601, %v1632
    %v1645 = vadd.f32 %v1602, %v1628
    %v1646 = vadd.f32 %v1603, %v1632
    %v1647 = vadd.f32 %v1604, %v1628
    %v1648 = vadd.f32 %v1605, %v1632
    %v1649 = vadd.f32 %v1606, %v1628
    %v1650 = vadd.f32 %v1607, %v1632
    %v1651 = vadd.f32 %v1608, %v1628
    %v1652 = vadd.f32 %v1609, %v1632
    %v1653 = vadd.f32 %v1610, %v1628
    %v1654 = vadd.f32 %v1611, %v1632
    %v1655 = vadd.f32 %v1612, %v1628
    %v1656 = vadd.f32 %v1613, %v1632
    %v1657 = vadd.f32 %v1614, %v1628
    %v1658 = vadd.f32 %v1615, %v1632
    %v1659 = vadd.f32 %v1616, %v1628
    %v1660 = vadd.f32 %v1617, %v1632
    %v1661 = vadd.f32 %v1618, %v1628
    %v1662 = vadd.f32 %v1619, %v1632
    %v1663 = vadd.f32 %v1620, %v1628
    %v1664 = vadd.f32 %v1621, %v1632
    %v1665 = vadd.f32 %v1622, %v1628
    %v1666 = vadd.f32 %v1623, %v1632
    %v1667 = vmax.f32 %v1635, 0.0
    %v1668 = vmax.f32 %v1636, 0.0
    %v1669 = vmax.f32 %v1637, 0.0
    %v1670 = vmax.f32 %v1638, 0.0
    %v1671 = vmax.f32 %v1639, 0.0
    %v1672 = vmax.f32 %v1640, 0.0
    %v1673 = vmax.f32 %v1641, 0.0
    %v1674 = vmax.f32 %v1642, 0.0
    %v1675 = vmax.f32 %v1643, 0.0
    %v1676 = vmax.f32 %v1644, 0.0
    %v1677 = vmax.f32 %v1645, 0.0
    %v1678 = vmax.f32 %v1646, 0.0
    %v1679 = vmax.f32 %v1647, 0.0
    %v1680 = vmax.f32 %v1648, 0.0
    %v1681 = vmax.f32 %v1649, 0.0
    %v1682 = vmax.f32 %v1650, 0.0
    %v1683 = vmax.f32 %v1651, 0.0
    %v1684 = vmax.f32 %v1652, 0.0
    %v1685 = vmax.f32 %v1653, 0.0
    %v1686 = vmax.f32 %v1654, 0.0
    %v1687 = vmax.f32 %v1655, 0.0
    %v1688 = vmax.f32 %v1656, 0.0
    %v1689 = vmax.f32 %v1657, 0.0
    %v1690 = vmax.f32 %v1658, 0.0
    %v1691 = vmax.f32 %v1659, 0.0
    %v1692 = vmax.f32 %v1660, 0.0
    %v1693 = vmax.f32 %v1661, 0.0
    %v1694 = vmax.f32 %v1662, 0.0
    %v1695 = vmax.f32 %v1663, 0.0
    %v1696 = vmax.f32 %v1664, 0.0
    %v1697 = vmax.f32 %v1665, 0.0
    %v1698 = vmax.f32 %v1666, 0.0
    %v1699 = vmax.f32 %v1667, %v1671
    %v1700 = vmax.f32 %v1668, %v1672
    %v1701 = vmax.f32 %v1669, %v1673
    %v1702 = vmax.f32 %v1670, %v1674
    %v1703 = vmax.f32 %v1675, %v1679
    %v1704 = vmax.f32 %v1676, %v1680
    %v1705 = vmax.f32 %v1677, %v1681
    %v1706 = vmax.f32 %v1678, %v1682
    %v1707 = vmax.f32 %v1683, %v1687
    %v1708 = vmax.f32 %v1684, %v1688
    %v1709 = vmax.f32 %v1685, %v1689
    %v1710 = vmax.f32 %v1686, %v1690
    %v1711 = vmax.f32 %v1691, %v1695
    %v1712 = vmax.f32 %v1692, %v1696
    %v1713 = vmax.f32 %v1693, %v1697
    %v1714 = vmax.f32 %v1694, %v1698
    %v1715 = vmax.f32 %v1699, %v1703
    %v1716 = vmax.f32 %v1700, %v1704
    %v1717 = vmax.f32 %v1701, %v1705
    %v1718 = vmax.f32 %v1702, %v1706
    %v1719 = vmax.f32 %v1707, %v1711
    %v1720 = vmax.f32 %v1708, %v1712
    %v1721 = vmax.f32 %v1709, %v1713
    %v1722 = vmax.f32 %v1710, %v1714
    %v1723 = vmax.f32 %v1715, %v1719
    %v1724 = vmax.f32 %v1716, %v1720
    %v1725 = vmax.f32 %v1717, %v1721
    %v1726 = vmax.f32 %v1718, %v1722
    %v1727 = vld [vmem:[#allocation5] sm:$0xff]
    %v1728 = vld [vmem:[#allocation5 + $0x8] sm:$0xff]
    %v1729 = vld [vmem:[#allocation7] sm:$0x38]
    %v1730 = vld [vmem:[#allocation7 + $0x17] ss:$0 sm:$0xff]
    %v1731 = vld [vmem:[#allocation7 + $0x20] ss:$0 sm:$0xff]
    %v1732 = vld [vmem:[#allocation7 + $0x21] ss:$0 sm:$0xff]
    %v1734 = vrot.slane %v1729, 3
    %v1736 = vsel %vm94, %v1727, 0
    %v1739 = vsel %vm94, %v1728, 0
    %v1741 = vsel %vm143, %v1734, 0
    %1743 = vmatprep.subr.mxu0 0.0
    %1744 = vmatpush1.msra.mxu0 %v1741
    %1745 = vmatprep.subr.mxu0 0.0
    %1746 = vmatpush1.msra.mxu0 0.0
    %1747 = vmatprep.subr.mxu0 0.0
    %1748 = vmatpush1.msra.mxu0 0.0
    %1749 = vmatprep.subr.mxu0 0.0
    %1750 = vmatpush1.msra.mxu0 0.0
    %1751 = vmatprep.subr.mxu0 0.0
    %1752 = vmatpush1.msra.mxu0 0.0
    %1753 = vmatprep.subr.mxu0 0.0
    %1754 = vmatpush1.msra.mxu0 0.0
    %1755 = vmatprep.subr.mxu0 0.0
    %1756 = vmatpush1.msra.mxu0 0.0
    %1757 = vmatprep.subr.mxu0 0.0
    %1758 = vmatpush1.msra.mxu0 0.0
    %1759 = vmatprep.subr.mxu0 0.0
    %1760 = vmatpush1.msra.mxu0 0.0
    %1761 = vmatprep.subr.mxu0 0.0
    %1762 = vmatpush1.msra.mxu0 0.0
    %1763 = vmatprep.subr.mxu0 0.0
    %1764 = vmatpush1.msra.mxu0 0.0
    %1765 = vmatprep.subr.mxu0 0.0
    %1766 = vmatpush1.msra.mxu0 0.0
    %1767 = vmatprep.subr.mxu0 0.0
    %1768 = vmatpush1.msra.mxu0 0.0
    %1769 = vmatprep.subr.mxu0 0.0
    %1770 = vmatpush1.msra.mxu0 0.0
    %1771 = vmatprep.subr.mxu0 0.0
    %1772 = vmatpush1.msra.mxu0 0.0
    %1773 = vmatprep.subr.mxu0 0.0
    %1774 = vmatpush1.msra.mxu0 0.0
    %1775 = vmatprep.subr.mxu0 0.0
    %1776 = vmatpush1.msra.mxu0 0.0
    %1777 = vmatprep.subr.mxu0 0.0
    %1778 = vmatpush1.msra.mxu0 0.0
    %1779 = vmatprep.subr.mxu0 0.0
    %1780 = vmatpush1.msra.mxu0 0.0
    %1781 = vmatprep.subr.mxu0 0.0
    %1782 = vmatpush1.msra.mxu0 0.0
    %1783 = vmatprep.subr.mxu0 0.0
    %1784 = vmatpush1.msra.mxu0 0.0
    %1785 = vmatprep.subr.mxu0 0.0
    %1786 = vmatpush1.msra.mxu0 0.0
    %1787 = vmatprep.subr.mxu0 0.0
    %1788 = vmatpush1.msra.mxu0 0.0
    %1789 = vmatprep.subr.mxu0 0.0
    %1790 = vmatpush1.msra.mxu0 0.0
    %1791 = vmatprep.subr.mxu0 0.0
    %1792 = vmatpush1.msra.mxu0 0.0
    %1793 = vmatprep.subr.mxu0 0.0
    %1794 = vmatpush1.msra.mxu0 0.0
    %1795 = vmatprep.subr.mxu0 0.0
    %1796 = vmatpush1.msra.mxu0 0.0
    %1797 = vmatprep.subr.mxu0 0.0
    %1798 = vmatpush1.msra.mxu0 0.0
    %1799 = vmatprep.subr.mxu0 0.0
    %1800 = vmatpush1.msra.mxu0 0.0
    %1801 = vmatprep.subr.mxu0 0.0
    %1802 = vmatpush1.msra.mxu0 0.0
    %1803 = vmatprep.subr.mxu0 0.0
    %1804 = vmatpush1.msra.mxu0 0.0
    %1805 = vmatprep.subr.mxu0 0.0
    %1806 = vmatpush1.msra.mxu0 0.0
    %1807 = vmatprep.mubr.f32.mxu0 0.0
    %1808 = vmatmul.mubr.f32.gmra.mrb[0].mxu0 %v1736
    %v1809 = vpop.f32.mrb[0].mxu0
    %v1810 = vadd.f32 %v1730, %v1809
    %v1811 = vpop.f32.mrb[0].mxu0
    %1812 = vmatprep.mubr.f32.mxu0 0.0
    %1813 = vmatmul.mubr.f32.gmra.mrb[0].mxu0 %v1739
    %v1814 = vpop.f32.mrb[0].mxu0
    %v1815 = vadd.f32 %v1730, %v1814
    %v1816 = vpop.f32.mrb[0].mxu0
    %1817 = vdwg.mxu0
    %v1818 = vsel %vm292, %v1810, 0.0
    %1819 = vadd.xlane.f32.xlu0 %v1818
    %v1820 = vpop.xlane.xlu0 %1819
    %v1821 = vsel %vm292, %v1815, 0.0
    %1822 = vadd.xlane.f32.xlu0 %v1821
    %v1823 = vpop.xlane.xlu0 %1822
    %v1824 = vmul.f32 %v1820, %v341
    %v1825 = vmul.f32 %v1823, %v341
    %v1826 = vmul.f32 %v1810, %v1810
    %v1827 = vmul.f32 %v1815, %v1815
    %v1828 = vsel %vm292, %v1826, 0.0
    %1829 = vadd.xlane.f32.xlu0 %v1828
    %v1830 = vpop.xlane.xlu0 %1829
    %v1831 = vsel %vm292, %v1827, 0.0
    %1832 = vadd.xlane.f32.xlu0 %v1831
    %v1833 = vpop.xlane.xlu0 %1832
    %v1834 = vmul.f32 %v1830, %v341
    %v1835 = vmul.f32 %v1833, %v341
    %v1836 = vmul.f32 %v1824, %v1824
    %v1837 = vmul.f32 %v1825, %v1825
    %v1838 = vsub.f32 %v1834, %v1836
    %v1839 = vsub.f32 %v1835, %v1837
    %v1840 = vmax.f32 %v1838, 0.0
    %v1841 = vmax.f32 %v1839, 0.0
    %v1842 = vsub.f32 %v1810, %v1824
    %v1843 = vsub.f32 %v1815, %v1825
    %v1844 = vadd.f32 %v1840, 1e-05
    %v1845 = vadd.f32 %v1841, 1e-05
    %v1846 = vrsqrt.pop %v1844
    %v1847 = vrsqrt.pop %v1845
    %v1848 = vmul.f32 %v1842, %v1846
    %v1849 = vmul.f32 %v1843, %v1847
    %v1850 = vmul.f32 %v1848, %v1731
    %v1851 = vmul.f32 %v1849, %v1731
    %v1852 = vadd.f32 %v1850, %v1732
    %v1853 = vadd.f32 %v1851, %v1732
    %v1854 = vmax.f32 %v1852, 0.0
    %v1855 = vmax.f32 %v1853, 0.0
    %v1856 = vpack.c.bf16 %v1855, %v1854
    %v1857 = vld [vmem:[#allocation8 + $0x80] sm:$0xf]
    %v1858 = vld [vmem:[#allocation8 + $0x88] sm:$0xf]
    %v1859 = vld [vmem:[#allocation8 + $0x90] sm:$0xf]
    %v1860 = vld [vmem:[#allocation8 + $0x98] sm:$0xf]
    %v1861 = vld [vmem:[#allocation8 + $0xa0] sm:$0xf]
    %v1862 = vld [vmem:[#allocation8 + $0xa8] sm:$0xf]
    %v1863 = vld [vmem:[#allocation8 + $0xb0] sm:$0xf]
    %v1864 = vld [vmem:[#allocation8 + $0xb8] sm:$0xf]
    %v1865 = vld [vmem:[#allocation7 + $0x22] ss:$0 sm:$0xff]
    %v1866 = vld [vmem:[#allocation7 + $0x23] ss:$0 sm:$0xff]
    %v1867 = vld [vmem:[#allocation7 + $0x24] ss:$0 sm:$0xff]
    %v1876 = vunpack.c.l.b16 %v1857
    %v1877 = vunpack.c.l.b16 %v1858
    %v1878 = vunpack.c.l.b16 %v1859
    %v1879 = vunpack.c.l.b16 %v1860
    %v1880 = vunpack.c.l.b16 %v1861
    %v1881 = vunpack.c.l.b16 %v1862
    %v1882 = vunpack.c.l.b16 %v1863
    %v1883 = vunpack.c.l.b16 %v1864
    %v1884 = vpack.c.b16 %v1877, %v1876
    %v1885 = vpack.c.b16 %v1879, %v1878
    %v1886 = vpack.c.b16 %v1881, %v1880
    %v1887 = vpack.c.b16 %v1883, %v1882
    %v1893 = vsel %vm292, %v1856, 0
    %1895 = vmatprep.subr.bf16.mxu0 0
    %1896 = vmatpush1.bf16.msra.mxu0 %v1884
    %1897 = vmatprep.subr.bf16.mxu0 0
    %1898 = vmatpush1.bf16.msra.mxu0 %v1885
    %1899 = vmatprep.subr.bf16.mxu0 0
    %1900 = vmatpush1.bf16.msra.mxu0 %v1886
    %1901 = vmatprep.subr.bf16.mxu0 0
    %1902 = vmatpush1.bf16.msra.mxu0 %v1887
    %1903 = vmatprep.subr.bf16.mxu0 0
    %1904 = vmatpush1.bf16.msra.mxu0 0
    %1905 = vmatprep.subr.bf16.mxu0 0
    %1906 = vmatpush1.bf16.msra.mxu0 0
    %1907 = vmatprep.subr.bf16.mxu0 0
    %1908 = vmatpush1.bf16.msra.mxu0 0
    %1909 = vmatprep.subr.bf16.mxu0 0
    %1910 = vmatpush1.bf16.msra.mxu0 0
    %1911 = vmatprep.subr.bf16.mxu0 0
    %1912 = vmatpush1.bf16.msra.mxu0 0
    %1913 = vmatprep.subr.bf16.mxu0 0
    %1914 = vmatpush1.bf16.msra.mxu0 0
    %1915 = vmatprep.subr.bf16.mxu0 0
    %1916 = vmatpush1.bf16.msra.mxu0 0
    %1917 = vmatprep.subr.bf16.mxu0 0
    %1918 = vmatpush1.bf16.msra.mxu0 0
    %1919 = vmatprep.subr.bf16.mxu0 0
    %1920 = vmatpush1.bf16.msra.mxu0 0
    %1921 = vmatprep.subr.bf16.mxu0 0
    %1922 = vmatpush1.bf16.msra.mxu0 0
    %1923 = vmatprep.subr.bf16.mxu0 0
    %1924 = vmatpush1.bf16.msra.mxu0 0
    %1925 = vmatprep.subr.bf16.mxu0 0
    %1926 = vmatpush1.bf16.msra.mxu0 0
    %1927 = vmatprep.mubr.bf16.mxu0 0
    %1928 = vmatmul.mubr.bf16.gmra.mrb[0].mxu0 %v1893
    %v1929 = vpop.f32.mrb[0].mxu0
    %v1930 = vadd.f32 %v1865, %v1929
    %v1931 = vpop.f32.mrb[0].mxu0
    %v1932 = vpop.f32.mrb[0].mxu0
    %v1933 = vadd.f32 %v1865, %v1932
    %v1934 = vpop.f32.mrb[0].mxu0
    %1935 = vdwg.mxu0
    %v1936 = vsel %vm292, %v1930, 0.0
    %1937 = vadd.xlane.f32.xlu0 %v1936
    %v1938 = vpop.xlane.xlu0 %1937
    %v1939 = vsel %vm292, %v1933, 0.0
    %1940 = vadd.xlane.f32.xlu0 %v1939
    %v1941 = vpop.xlane.xlu0 %1940
    %v1942 = vmul.f32 %v1938, %v341
    %v1943 = vmul.f32 %v1941, %v341
    %v1944 = vmul.f32 %v1930, %v1930
    %v1945 = vmul.f32 %v1933, %v1933
    %v1946 = vsel %vm292, %v1944, 0.0
    %1947 = vadd.xlane.f32.xlu0 %v1946
    %v1948 = vpop.xlane.xlu0 %1947
    %v1949 = vsel %vm292, %v1945, 0.0
    %1950 = vadd.xlane.f32.xlu0 %v1949
    %v1951 = vpop.xlane.xlu0 %1950
    %v1952 = vmul.f32 %v1948, %v341
    %v1953 = vmul.f32 %v1951, %v341
    %v1954 = vmul.f32 %v1942, %v1942
    %v1955 = vmul.f32 %v1943, %v1943
    %v1956 = vsub.f32 %v1952, %v1954
    %v1957 = vsub.f32 %v1953, %v1955
    %v1958 = vmax.f32 %v1956, 0.0
    %v1959 = vmax.f32 %v1957, 0.0
    %v1960 = vsub.f32 %v1930, %v1942
    %v1961 = vsub.f32 %v1933, %v1943
    %v1962 = vadd.f32 %v1958, 1e-05
    %v1963 = vadd.f32 %v1959, 1e-05
    %v1964 = vrsqrt.pop %v1962
    %v1965 = vrsqrt.pop %v1963
    %v1966 = vmul.f32 %v1960, %v1964
    %v1967 = vmul.f32 %v1961, %v1965
    %v1968 = vmul.f32 %v1966, %v1866
    %v1969 = vmul.f32 %v1967, %v1866
    %v1970 = vadd.f32 %v1968, %v1867
    %v1971 = vadd.f32 %v1969, %v1867
    %v1972 = vmax.f32 %v1970, 0.0
    %v1973 = vmax.f32 %v1971, 0.0
    %v1974 = vpack.c.bf16 %v1973, %v1972
    %v1975 = vld [vmem:[#allocation8 + $0xc0] sm:$0xff]
    %v1976 = vld [vmem:[#allocation8 + $0xc8] sm:$0xff]
    %v1977 = vld [vmem:[#allocation8 + $0xd0] sm:$0xff]
    %v1978 = vld [vmem:[#allocation8 + $0xd8] sm:$0xff]
    %v1979 = vld [vmem:[#allocation8 + $0xe0] sm:$0xff]
    %v1980 = vld [vmem:[#allocation8 + $0xe8] sm:$0xff]
    %v1981 = vld [vmem:[#allocation8 + $0xf0] sm:$0xff]
    %v1982 = vld [vmem:[#allocation8 + $0xf8] sm:$0xff]
    %s1983 = scalar_lea.vmem [#allocation7], 37
    %v1984 = vld [vmem:[%s1983] ss:$8 sm:$0x3]
    %s1985 = scalar_lea.vmem [#allocation7], 38
    %v1986 = vld [vmem:[%s1985] ss:$8 sm:$0x3]
    %s1987 = scalar_lea.vmem [#allocation7], 39
    %v1988 = vld [vmem:[%s1987] ss:$8 sm:$0x3]
    %v1990 = vlaneseq
    %v1991 = vshrl.u32 %v1990, 7
    %v1992 = vsub.s32 0, %v1991
    %v1993 = vrot.slane %v1984, %v1992
    %v1994 = vlaneseq
    %v1995 = vshrl.u32 %v1994, 7
    %v1996 = vsub.s32 1, %v1995
    %v1997 = vrot.slane %v1984, %v1996
    %v2008 = vunpack.c.l.b16 %v1975
    %v2009 = vunpack.c.h.b16 %v1975
    %v2010 = vunpack.c.l.b16 %v1976
    %v2011 = vunpack.c.h.b16 %v1976
    %v2012 = vunpack.c.l.b16 %v1977
    %v2013 = vunpack.c.h.b16 %v1977
    %v2014 = vunpack.c.l.b16 %v1978
    %v2015 = vunpack.c.h.b16 %v1978
    %v2016 = vunpack.c.l.b16 %v1979
    %v2017 = vunpack.c.h.b16 %v1979
    %v2018 = vunpack.c.l.b16 %v1980
    %v2019 = vunpack.c.h.b16 %v1980
    %v2020 = vunpack.c.l.b16 %v1981
    %v2021 = vunpack.c.h.b16 %v1981
    %v2022 = vunpack.c.l.b16 %v1982
    %v2023 = vunpack.c.h.b16 %v1982
    %v2024 = vpack.c.b16 %v2010, %v2008
    %v2025 = vpack.c.b16 %v2011, %v2009
    %v2026 = vpack.c.b16 %v2014, %v2012
    %v2027 = vpack.c.b16 %v2015, %v2013
    %v2028 = vpack.c.b16 %v2018, %v2016
    %v2029 = vpack.c.b16 %v2019, %v2017
    %v2030 = vpack.c.b16 %v2022, %v2020
    %v2031 = vpack.c.b16 %v2023, %v2021
    %v2041 = vsel %vm292, %v1974, 0
    %2043 = vmatprep.subr.bf16.mxu0 %v2025
    %2044 = vmatpush1.bf16.msra.mxu0 %v2024
    %2045 = vmatprep.subr.bf16.mxu0 %v2027
    %2046 = vmatpush1.bf16.msra.mxu0 %v2026
    %2047 = vmatprep.subr.bf16.mxu0 %v2029
    %2048 = vmatpush1.bf16.msra.mxu0 %v2028
    %2049 = vmatprep.subr.bf16.mxu0 %v2031
    %2050 = vmatpush1.bf16.msra.mxu0 %v2030
    %2051 = vmatprep.subr.bf16.mxu0 0
    %2052 = vmatpush1.bf16.msra.mxu0 0
    %2053 = vmatprep.subr.bf16.mxu0 0
    %2054 = vmatpush1.bf16.msra.mxu0 0
    %2055 = vmatprep.subr.bf16.mxu0 0
    %2056 = vmatpush1.bf16.msra.mxu0 0
    %2057 = vmatprep.subr.bf16.mxu0 0
    %2058 = vmatpush1.bf16.msra.mxu0 0
    %2059 = vmatprep.subr.bf16.mxu0 0
    %2060 = vmatpush1.bf16.msra.mxu0 0
    %2061 = vmatprep.subr.bf16.mxu0 0
    %2062 = vmatpush1.bf16.msra.mxu0 0
    %2063 = vmatprep.subr.bf16.mxu0 0
    %2064 = vmatpush1.bf16.msra.mxu0 0
    %2065 = vmatprep.subr.bf16.mxu0 0
    %2066 = vmatpush1.bf16.msra.mxu0 0
    %2067 = vmatprep.subr.bf16.mxu0 0
    %2068 = vmatpush1.bf16.msra.mxu0 0
    %2069 = vmatprep.subr.bf16.mxu0 0
    %2070 = vmatpush1.bf16.msra.mxu0 0
    %2071 = vmatprep.subr.bf16.mxu0 0
    %2072 = vmatpush1.bf16.msra.mxu0 0
    %2073 = vmatprep.subr.bf16.mxu0 0
    %2074 = vmatpush1.bf16.msra.mxu0 0
    %2075 = vmatprep.mubr.bf16.mxu0 0
    %2076 = vmatmul.mubr.bf16.gmra.mrb[0].mxu0 %v2041
    %v2077 = vpop.f32.mrb[0].mxu0
    %v2078 = vadd.f32 %v1993, %v2077
    %v2079 = vpop.f32.mrb[0].mxu0
    %v2080 = vadd.f32 %v1997, %v2079
    %v2081 = vpop.f32.mrb[0].mxu0
    %v2082 = vadd.f32 %v1993, %v2081
    %v2083 = vpop.f32.mrb[0].mxu0
    %v2084 = vadd.f32 %v1997, %v2083
    %2085 = vdwg.mxu0
    %v2086 = vadd.f32 %v2078, %v2080
    %2087 = vadd.xlane.f32.xlu0 %v2086
    %v2088 = vpop.xlane.xlu0 %2087
    %v2089 = vadd.f32 %v2082, %v2084
    %2090 = vadd.xlane.f32.xlu0 %v2089
    %v2091 = vpop.xlane.xlu0 %2090
    %v2092 = vmul.f32 %v2088, %v1324
    %v2093 = vmul.f32 %v2091, %v1324
    %v2094 = vmul.f32 %v2078, %v2078
    %v2095 = vmul.f32 %v2080, %v2080
    %v2096 = vmul.f32 %v2082, %v2082
    %v2097 = vmul.f32 %v2084, %v2084
    %v2098 = vadd.f32 %v2094, %v2095
    %2099 = vadd.xlane.f32.xlu0 %v2098
    %v2100 = vpop.xlane.xlu0 %2099
    %v2101 = vadd.f32 %v2096, %v2097
    %2102 = vadd.xlane.f32.xlu0 %v2101
    %v2103 = vpop.xlane.xlu0 %2102
    %v2104 = vmul.f32 %v2100, %v1324
    %v2105 = vmul.f32 %v2103, %v1324
    %v2106 = vmul.f32 %v2092, %v2092
    %v2107 = vmul.f32 %v2093, %v2093
    %v2108 = vsub.f32 %v2104, %v2106
    %v2109 = vsub.f32 %v2105, %v2107
    %v2110 = vmax.f32 %v2108, 0.0
    %v2111 = vmax.f32 %v2109, 0.0
    %v2112 = vsub.f32 %v2078, %v2092
    %v2113 = vsub.f32 %v2080, %v2092
    %v2114 = vsub.f32 %v2082, %v2093
    %v2115 = vsub.f32 %v2084, %v2093
    %v2116 = vadd.f32 %v2110, 1e-05
    %v2117 = vadd.f32 %v2111, 1e-05
    %v2118 = vrsqrt.pop %v2116
    %v2119 = vrsqrt.pop %v2117
    %v2120 = vmul.f32 %v2112, %v2118
    %v2121 = vmul.f32 %v2113, %v2118
    %v2122 = vmul.f32 %v2114, %v2119
    %v2123 = vmul.f32 %v2115, %v2119
    %v2125 = vlaneseq
    %v2126 = vshrl.u32 %v2125, 7
    %v2127 = vsub.s32 0, %v2126
    %v2128 = vrot.slane %v1986, %v2127
    %v2129 = vlaneseq
    %v2130 = vshrl.u32 %v2129, 7
    %v2131 = vsub.s32 1, %v2130
    %v2132 = vrot.slane %v1986, %v2131
    %v2135 = vmul.f32 %v2120, %v2128
    %v2136 = vmul.f32 %v2121, %v2132
    %v2137 = vmul.f32 %v2122, %v2128
    %v2138 = vmul.f32 %v2123, %v2132
    %v2140 = vlaneseq
    %v2141 = vshrl.u32 %v2140, 7
    %v2142 = vsub.s32 0, %v2141
    %v2143 = vrot.slane %v1988, %v2142
    %v2144 = vlaneseq
    %v2145 = vshrl.u32 %v2144, 7
    %v2146 = vsub.s32 1, %v2145
    %v2147 = vrot.slane %v1988, %v2146
    %v2150 = vadd.f32 %v2135, %v2143
    %v2151 = vadd.f32 %v2136, %v2147
    %v2152 = vadd.f32 %v2137, %v2143
    %v2153 = vadd.f32 %v2138, %v2147
    %v2154 = vmax.f32 %v2150, 0.0
    %v2155 = vmax.f32 %v2151, 0.0
    %v2156 = vmax.f32 %v2152, 0.0
    %v2157 = vmax.f32 %v2153, 0.0
    %v2158 = vpack.c.bf16 %v1725, %v1723
    %v2159 = vpack.c.bf16 %v1726, %v1724
    %v2160 = vld [vmem:[#allocation8 + $0x100] sm:$0xff]
    %v2161 = vld [vmem:[#allocation8 + $0x108] sm:$0xff]
    %v2162 = vld [vmem:[#allocation8 + $0x110] sm:$0xff]
    %v2163 = vld [vmem:[#allocation8 + $0x118] sm:$0xff]
    %v2164 = vld [vmem:[#allocation8 + $0x120] sm:$0xff]
    %v2165 = vld [vmem:[#allocation8 + $0x128] sm:$0xff]
    %v2166 = vld [vmem:[#allocation8 + $0x130] sm:$0xff]
    %v2167 = vld [vmem:[#allocation8 + $0x138] sm:$0xff]
    %v2168 = vld [vmem:[#allocation8 + $0x140] sm:$0xff]
    %v2169 = vld [vmem:[#allocation8 + $0x148] sm:$0xff]
    %v2170 = vld [vmem:[#allocation8 + $0x150] sm:$0xff]
    %v2171 = vld [vmem:[#allocation8 + $0x158] sm:$0xff]
    %v2172 = vld [vmem:[#allocation8 + $0x160] sm:$0xff]
    %v2173 = vld [vmem:[#allocation8 + $0x168] sm:$0xff]
    %v2174 = vld [vmem:[#allocation8 + $0x170] sm:$0xff]
    %v2175 = vld [vmem:[#allocation8 + $0x178] sm:$0xff]
    %v2176 = vld [vmem:[#allocation8 + $0x180] sm:$0xff]
    %v2177 = vld [vmem:[#allocation8 + $0x188] sm:$0xff]
    %v2178 = vld [vmem:[#allocation8 + $0x190] sm:$0xff]
    %v2179 = vld [vmem:[#allocation8 + $0x198] sm:$0xff]
    %v2180 = vld [vmem:[#allocation8 + $0x1a0] sm:$0xff]
    %v2181 = vld [vmem:[#allocation8 + $0x1a8] sm:$0xff]
    %v2182 = vld [vmem:[#allocation8 + $0x1b0] sm:$0xff]
    %v2183 = vld [vmem:[#allocation8 + $0x1b8] sm:$0xff]
    %v2184 = vld [vmem:[#allocation8 + $0x1c0] sm:$0xff]
    %v2185 = vld [vmem:[#allocation8 + $0x1c8] sm:$0xff]
    %v2186 = vld [vmem:[#allocation8 + $0x1d0] sm:$0xff]
    %v2187 = vld [vmem:[#allocation8 + $0x1d8] sm:$0xff]
    %v2188 = vld [vmem:[#allocation8 + $0x1e0] sm:$0xff]
    %v2189 = vld [vmem:[#allocation8 + $0x1e8] sm:$0xff]
    %v2190 = vld [vmem:[#allocation8 + $0x1f0] sm:$0xff]
    %v2191 = vld [vmem:[#allocation8 + $0x1f8] sm:$0xff]
    %v2192 = vpack.c.bf16 %v2156, %v2154
    %v2193 = vpack.c.bf16 %v2157, %v2155
    %v2194 = vld [vmem:[#allocation8 + $0x200] sm:$0xff]
    %v2195 = vld [vmem:[#allocation8 + $0x208] sm:$0xff]
    %v2196 = vld [vmem:[#allocation8 + $0x210] sm:$0xff]
    %v2197 = vld [vmem:[#allocation8 + $0x218] sm:$0xff]
    %v2198 = vld [vmem:[#allocation8 + $0x220] sm:$0xff]
    %v2199 = vld [vmem:[#allocation8 + $0x228] sm:$0xff]
    %v2200 = vld [vmem:[#allocation8 + $0x230] sm:$0xff]
    %v2201 = vld [vmem:[#allocation8 + $0x238] sm:$0xff]
    %v2202 = vld [vmem:[#allocation8 + $0x240] sm:$0xff]
    %v2203 = vld [vmem:[#allocation8 + $0x248] sm:$0xff]
    %v2204 = vld [vmem:[#allocation8 + $0x250] sm:$0xff]
    %v2205 = vld [vmem:[#allocation8 + $0x258] sm:$0xff]
    %v2206 = vld [vmem:[#allocation8 + $0x260] sm:$0xff]
    %v2207 = vld [vmem:[#allocation8 + $0x268] sm:$0xff]
    %v2208 = vld [vmem:[#allocation8 + $0x270] sm:$0xff]
    %v2209 = vld [vmem:[#allocation8 + $0x278] sm:$0xff]
    %v2210 = vld [vmem:[#allocation8 + $0x280] sm:$0xff]
    %v2211 = vld [vmem:[#allocation8 + $0x288] sm:$0xff]
    %v2212 = vld [vmem:[#allocation8 + $0x290] sm:$0xff]
    %v2213 = vld [vmem:[#allocation8 + $0x298] sm:$0xff]
    %v2214 = vld [vmem:[#allocation8 + $0x2a0] sm:$0xff]
    %v2215 = vld [vmem:[#allocation8 + $0x2a8] sm:$0xff]
    %v2216 = vld [vmem:[#allocation8 + $0x2b0] sm:$0xff]
    %v2217 = vld [vmem:[#allocation8 + $0x2b8] sm:$0xff]
    %v2218 = vld [vmem:[#allocation8 + $0x2c0] sm:$0xff]
    %v2219 = vld [vmem:[#allocation8 + $0x2c8] sm:$0xff]
    %v2220 = vld [vmem:[#allocation8 + $0x2d0] sm:$0xff]
    %v2221 = vld [vmem:[#allocation8 + $0x2d8] sm:$0xff]
    %v2222 = vld [vmem:[#allocation8 + $0x2e0] sm:$0xff]
    %v2223 = vld [vmem:[#allocation8 + $0x2e8] sm:$0xff]
    %v2224 = vld [vmem:[#allocation8 + $0x2f0] sm:$0xff]
    %v2225 = vld [vmem:[#allocation8 + $0x2f8] sm:$0xff]
    %v2258 = vunpack.c.l.b16 %v2194
    %v2259 = vunpack.c.h.b16 %v2194
    %v2260 = vunpack.c.l.b16 %v2195
    %v2261 = vunpack.c.h.b16 %v2195
    %v2262 = vunpack.c.l.b16 %v2196
    %v2263 = vunpack.c.h.b16 %v2196
    %v2264 = vunpack.c.l.b16 %v2197
    %v2265 = vunpack.c.h.b16 %v2197
    %v2266 = vunpack.c.l.b16 %v2198
    %v2267 = vunpack.c.h.b16 %v2198
    %v2268 = vunpack.c.l.b16 %v2199
    %v2269 = vunpack.c.h.b16 %v2199
    %v2270 = vunpack.c.l.b16 %v2200
    %v2271 = vunpack.c.h.b16 %v2200
    %v2272 = vunpack.c.l.b16 %v2201
    %v2273 = vunpack.c.h.b16 %v2201
    %v2274 = vunpack.c.l.b16 %v2202
    %v2275 = vunpack.c.h.b16 %v2202
    %v2276 = vunpack.c.l.b16 %v2203
    %v2277 = vunpack.c.h.b16 %v2203
    %v2278 = vunpack.c.l.b16 %v2204
    %v2279 = vunpack.c.h.b16 %v2204
    %v2280 = vunpack.c.l.b16 %v2205
    %v2281 = vunpack.c.h.b16 %v2205
    %v2282 = vunpack.c.l.b16 %v2206
    %v2283 = vunpack.c.h.b16 %v2206
    %v2284 = vunpack.c.l.b16 %v2207
    %v2285 = vunpack.c.h.b16 %v2207
    %v2286 = vunpack.c.l.b16 %v2208
    %v2287 = vunpack.c.h.b16 %v2208
    %v2288 = vunpack.c.l.b16 %v2209
    %v2289 = vunpack.c.h.b16 %v2209
    %v2290 = vunpack.c.l.b16 %v2210
    %v2291 = vunpack.c.h.b16 %v2210
    %v2292 = vunpack.c.l.b16 %v2211
    %v2293 = vunpack.c.h.b16 %v2211
    %v2294 = vunpack.c.l.b16 %v2212
    %v2295 = vunpack.c.h.b16 %v2212
    %v2296 = vunpack.c.l.b16 %v2213
    %v2297 = vunpack.c.h.b16 %v2213
    %v2298 = vunpack.c.l.b16 %v2214
    %v2299 = vunpack.c.h.b16 %v2214
    %v2300 = vunpack.c.l.b16 %v2215
    %v2301 = vunpack.c.h.b16 %v2215
    %v2302 = vunpack.c.l.b16 %v2216
    %v2303 = vunpack.c.h.b16 %v2216
    %v2304 = vunpack.c.l.b16 %v2217
    %v2305 = vunpack.c.h.b16 %v2217
    %v2306 = vunpack.c.l.b16 %v2218
    %v2307 = vunpack.c.h.b16 %v2218
    %v2308 = vunpack.c.l.b16 %v2219
    %v2309 = vunpack.c.h.b16 %v2219
    %v2310 = vunpack.c.l.b16 %v2220
    %v2311 = vunpack.c.h.b16 %v2220
    %v2312 = vunpack.c.l.b16 %v2221
    %v2313 = vunpack.c.h.b16 %v2221
    %v2314 = vunpack.c.l.b16 %v2222
    %v2315 = vunpack.c.h.b16 %v2222
    %v2316 = vunpack.c.l.b16 %v2223
    %v2317 = vunpack.c.h.b16 %v2223
    %v2318 = vunpack.c.l.b16 %v2224
    %v2319 = vunpack.c.h.b16 %v2224
    %v2320 = vunpack.c.l.b16 %v2225
    %v2321 = vunpack.c.h.b16 %v2225
    %v2322 = vpack.c.b16 %v2260, %v2258
    %v2323 = vpack.c.b16 %v2261, %v2259
    %v2324 = vpack.c.b16 %v2264, %v2262
    %v2325 = vpack.c.b16 %v2265, %v2263
    %v2326 = vpack.c.b16 %v2268, %v2266
    %v2327 = vpack.c.b16 %v2269, %v2267
    %v2328 = vpack.c.b16 %v2272, %v2270
    %v2329 = vpack.c.b16 %v2273, %v2271
    %v2330 = vpack.c.b16 %v2276, %v2274
    %v2331 = vpack.c.b16 %v2277, %v2275
    %v2332 = vpack.c.b16 %v2280, %v2278
    %v2333 = vpack.c.b16 %v2281, %v2279
    %v2334 = vpack.c.b16 %v2284, %v2282
    %v2335 = vpack.c.b16 %v2285, %v2283
    %v2336 = vpack.c.b16 %v2288, %v2286
    %v2337 = vpack.c.b16 %v2289, %v2287
    %v2338 = vpack.c.b16 %v2292, %v2290
    %v2339 = vpack.c.b16 %v2293, %v2291
    %v2340 = vpack.c.b16 %v2296, %v2294
    %v2341 = vpack.c.b16 %v2297, %v2295
    %v2342 = vpack.c.b16 %v2300, %v2298
    %v2343 = vpack.c.b16 %v2301, %v2299
    %v2344 = vpack.c.b16 %v2304, %v2302
    %v2345 = vpack.c.b16 %v2305, %v2303
    %v2346 = vpack.c.b16 %v2308, %v2306
    %v2347 = vpack.c.b16 %v2309, %v2307
    %v2348 = vpack.c.b16 %v2312, %v2310
    %v2349 = vpack.c.b16 %v2313, %v2311
    %v2350 = vpack.c.b16 %v2316, %v2314
    %v2351 = vpack.c.b16 %v2317, %v2315
    %v2352 = vpack.c.b16 %v2320, %v2318
    %v2353 = vpack.c.b16 %v2321, %v2319
    %2386 = vmatprep.subr.bf16.mxu0 %v2323
    %2387 = vmatpush1.bf16.msra.mxu0 %v2322
    %2388 = vmatprep.subr.bf16.mxu0 %v2325
    %2389 = vmatpush1.bf16.msra.mxu0 %v2324
    %2390 = vmatprep.subr.bf16.mxu0 %v2327
    %2391 = vmatpush1.bf16.msra.mxu0 %v2326
    %2392 = vmatprep.subr.bf16.mxu0 %v2329
    %2393 = vmatpush1.bf16.msra.mxu0 %v2328
    %2394 = vmatprep.subr.bf16.mxu0 %v2331
    %2395 = vmatpush1.bf16.msra.mxu0 %v2330
    %2396 = vmatprep.subr.bf16.mxu0 %v2333
    %2397 = vmatpush1.bf16.msra.mxu0 %v2332
    %2398 = vmatprep.subr.bf16.mxu0 %v2335
    %2399 = vmatpush1.bf16.msra.mxu0 %v2334
    %2400 = vmatprep.subr.bf16.mxu0 %v2337
    %2401 = vmatpush1.bf16.msra.mxu0 %v2336
    %2402 = vmatprep.subr.bf16.mxu0 %v2339
    %2403 = vmatpush1.bf16.msra.mxu0 %v2338
    %2404 = vmatprep.subr.bf16.mxu0 %v2341
    %2405 = vmatpush1.bf16.msra.mxu0 %v2340
    %2406 = vmatprep.subr.bf16.mxu0 %v2343
    %2407 = vmatpush1.bf16.msra.mxu0 %v2342
    %2408 = vmatprep.subr.bf16.mxu0 %v2345
    %2409 = vmatpush1.bf16.msra.mxu0 %v2344
    %2410 = vmatprep.subr.bf16.mxu0 %v2347
    %2411 = vmatpush1.bf16.msra.mxu0 %v2346
    %2412 = vmatprep.subr.bf16.mxu0 %v2349
    %2413 = vmatpush1.bf16.msra.mxu0 %v2348
    %2414 = vmatprep.subr.bf16.mxu0 %v2351
    %2415 = vmatpush1.bf16.msra.mxu0 %v2350
    %2416 = vmatprep.subr.bf16.mxu0 %v2353
    %2417 = vmatpush1.bf16.msra.mxu0 %v2352
    %2418 = vmatprep.mubr.bf16.mxu0 %v2193
    %2419 = vmatmul.mubr.bf16.gmra.mrb[0].mxu0 %v2192
    %v2420 = vpop.f32.mrb[0].mxu0
    %v2421 = vadd.f32 0.0, %v2420
    %v2422 = vpop.f32.mrb[0].mxu0
    %v2423 = vadd.f32 0.0, %v2422
    %v2424 = vpop.f32.mrb[0].mxu0
    %v2425 = vadd.f32 0.0, %v2424
    %v2426 = vpop.f32.mrb[0].mxu0
    %v2427 = vadd.f32 0.0, %v2426
    %2428 = vdwg.mxu0
    %v2461 = vunpack.c.l.b16 %v2160
    %v2462 = vunpack.c.h.b16 %v2160
    %v2463 = vunpack.c.l.b16 %v2161
    %v2464 = vunpack.c.h.b16 %v2161
    %v2465 = vunpack.c.l.b16 %v2162
    %v2466 = vunpack.c.h.b16 %v2162
    %v2467 = vunpack.c.l.b16 %v2163
    %v2468 = vunpack.c.h.b16 %v2163
    %v2469 = vunpack.c.l.b16 %v2164
    %v2470 = vunpack.c.h.b16 %v2164
    %v2471 = vunpack.c.l.b16 %v2165
    %v2472 = vunpack.c.h.b16 %v2165
    %v2473 = vunpack.c.l.b16 %v2166
    %v2474 = vunpack.c.h.b16 %v2166
    %v2475 = vunpack.c.l.b16 %v2167
    %v2476 = vunpack.c.h.b16 %v2167
    %v2477 = vunpack.c.l.b16 %v2168
    %v2478 = vunpack.c.h.b16 %v2168
    %v2479 = vunpack.c.l.b16 %v2169
    %v2480 = vunpack.c.h.b16 %v2169
    %v2481 = vunpack.c.l.b16 %v2170
    %v2482 = vunpack.c.h.b16 %v2170
    %v2483 = vunpack.c.l.b16 %v2171
    %v2484 = vunpack.c.h.b16 %v2171
    %v2485 = vunpack.c.l.b16 %v2172
    %v2486 = vunpack.c.h.b16 %v2172
    %v2487 = vunpack.c.l.b16 %v2173
    %v2488 = vunpack.c.h.b16 %v2173
    %v2489 = vunpack.c.l.b16 %v2174
    %v2490 = vunpack.c.h.b16 %v2174
    %v2491 = vunpack.c.l.b16 %v2175
    %v2492 = vunpack.c.h.b16 %v2175
    %v2493 = vunpack.c.l.b16 %v2176
    %v2494 = vunpack.c.h.b16 %v2176
    %v2495 = vunpack.c.l.b16 %v2177
    %v2496 = vunpack.c.h.b16 %v2177
    %v2497 = vunpack.c.l.b16 %v2178
    %v2498 = vunpack.c.h.b16 %v2178
    %v2499 = vunpack.c.l.b16 %v2179
    %v2500 = vunpack.c.h.b16 %v2179
    %v2501 = vunpack.c.l.b16 %v2180
    %v2502 = vunpack.c.h.b16 %v2180
    %v2503 = vunpack.c.l.b16 %v2181
    %v2504 = vunpack.c.h.b16 %v2181
    %v2505 = vunpack.c.l.b16 %v2182
    %v2506 = vunpack.c.h.b16 %v2182
    %v2507 = vunpack.c.l.b16 %v2183
    %v2508 = vunpack.c.h.b16 %v2183
    %v2509 = vunpack.c.l.b16 %v2184
    %v2510 = vunpack.c.h.b16 %v2184
    %v2511 = vunpack.c.l.b16 %v2185
    %v2512 = vunpack.c.h.b16 %v2185
    %v2513 = vunpack.c.l.b16 %v2186
    %v2514 = vunpack.c.h.b16 %v2186
    %v2515 = vunpack.c.l.b16 %v2187
    %v2516 = vunpack.c.h.b16 %v2187
    %v2517 = vunpack.c.l.b16 %v2188
    %v2518 = vunpack.c.h.b16 %v2188
    %v2519 = vunpack.c.l.b16 %v2189
    %v2520 = vunpack.c.h.b16 %v2189
    %v2521 = vunpack.c.l.b16 %v2190
    %v2522 = vunpack.c.h.b16 %v2190
    %v2523 = vunpack.c.l.b16 %v2191
    %v2524 = vunpack.c.h.b16 %v2191
    %v2525 = vpack.c.b16 %v2463, %v2461
    %v2526 = vpack.c.b16 %v2464, %v2462
    %v2527 = vpack.c.b16 %v2467, %v2465
    %v2528 = vpack.c.b16 %v2468, %v2466
    %v2529 = vpack.c.b16 %v2471, %v2469
    %v2530 = vpack.c.b16 %v2472, %v2470
    %v2531 = vpack.c.b16 %v2475, %v2473
    %v2532 = vpack.c.b16 %v2476, %v2474
    %v2533 = vpack.c.b16 %v2479, %v2477
    %v2534 = vpack.c.b16 %v2480, %v2478
    %v2535 = vpack.c.b16 %v2483, %v2481
    %v2536 = vpack.c.b16 %v2484, %v2482
    %v2537 = vpack.c.b16 %v2487, %v2485
    %v2538 = vpack.c.b16 %v2488, %v2486
    %v2539 = vpack.c.b16 %v2491, %v2489
    %v2540 = vpack.c.b16 %v2492, %v2490
    %v2541 = vpack.c.b16 %v2495, %v2493
    %v2542 = vpack.c.b16 %v2496, %v2494
    %v2543 = vpack.c.b16 %v2499, %v2497
    %v2544 = vpack.c.b16 %v2500, %v2498
    %v2545 = vpack.c.b16 %v2503, %v2501
    %v2546 = vpack.c.b16 %v2504, %v2502
    %v2547 = vpack.c.b16 %v2507, %v2505
    %v2548 = vpack.c.b16 %v2508, %v2506
    %v2549 = vpack.c.b16 %v2511, %v2509
    %v2550 = vpack.c.b16 %v2512, %v2510
    %v2551 = vpack.c.b16 %v2515, %v2513
    %v2552 = vpack.c.b16 %v2516, %v2514
    %v2553 = vpack.c.b16 %v2519, %v2517
    %v2554 = vpack.c.b16 %v2520, %v2518
    %v2555 = vpack.c.b16 %v2523, %v2521
    %v2556 = vpack.c.b16 %v2524, %v2522
    %2589 = vmatprep.subr.bf16.mxu0 %v2526
    %2590 = vmatpush1.bf16.msra.mxu0 %v2525
    %2591 = vmatprep.subr.bf16.mxu0 %v2528
    %2592 = vmatpush1.bf16.msra.mxu0 %v2527
    %2593 = vmatprep.subr.bf16.mxu0 %v2530
    %2594 = vmatpush1.bf16.msra.mxu0 %v2529
    %2595 = vmatprep.subr.bf16.mxu0 %v2532
    %2596 = vmatpush1.bf16.msra.mxu0 %v2531
    %2597 = vmatprep.subr.bf16.mxu0 %v2534
    %2598 = vmatpush1.bf16.msra.mxu0 %v2533
    %2599 = vmatprep.subr.bf16.mxu0 %v2536
    %2600 = vmatpush1.bf16.msra.mxu0 %v2535
    %2601 = vmatprep.subr.bf16.mxu0 %v2538
    %2602 = vmatpush1.bf16.msra.mxu0 %v2537
    %2603 = vmatprep.subr.bf16.mxu0 %v2540
    %2604 = vmatpush1.bf16.msra.mxu0 %v2539
    %2605 = vmatprep.subr.bf16.mxu0 %v2542
    %2606 = vmatpush1.bf16.msra.mxu0 %v2541
    %2607 = vmatprep.subr.bf16.mxu0 %v2544
    %2608 = vmatpush1.bf16.msra.mxu0 %v2543
    %2609 = vmatprep.subr.bf16.mxu0 %v2546
    %2610 = vmatpush1.bf16.msra.mxu0 %v2545
    %2611 = vmatprep.subr.bf16.mxu0 %v2548
    %2612 = vmatpush1.bf16.msra.mxu0 %v2547
    %2613 = vmatprep.subr.bf16.mxu0 %v2550
    %2614 = vmatpush1.bf16.msra.mxu0 %v2549
    %2615 = vmatprep.subr.bf16.mxu0 %v2552
    %2616 = vmatpush1.bf16.msra.mxu0 %v2551
    %2617 = vmatprep.subr.bf16.mxu0 %v2554
    %2618 = vmatpush1.bf16.msra.mxu0 %v2553
    %2619 = vmatprep.subr.bf16.mxu0 %v2556
    %2620 = vmatpush1.bf16.msra.mxu0 %v2555
    %2621 = vmatprep.mubr.bf16.mxu0 %v2159
    %2622 = vmatmul.mubr.bf16.gmra.mrb[0].mxu0 %v2158
    %v2623 = vpop.f32.mrb[0].mxu0
    %v2624 = vadd.f32 %v2421, %v2623
    %v2625 = vpop.f32.mrb[0].mxu0
    %v2626 = vadd.f32 %v2423, %v2625
    %v2627 = vpop.f32.mrb[0].mxu0
    %v2628 = vadd.f32 %v2425, %v2627
    %v2629 = vpop.f32.mrb[0].mxu0
    %v2630 = vadd.f32 %v2427, %v2629
    %2631 = vdwg.mxu0
    %s2632 = scalar_lea.vmem [#allocation7], 48
    %v2633 = vld [vmem:[%s2632] ss:$8 sm:$0x3]
    %s2634 = scalar_lea.vmem [#allocation7], 49
    %v2635 = vld [vmem:[%s2634] ss:$8 sm:$0x3]
    %s2636 = scalar_lea.vmem [#allocation7], 50
    %v2637 = vld [vmem:[%s2636] ss:$8 sm:$0x3]
    %v2639 = vlaneseq
    %v2640 = vshrl.u32 %v2639, 7
    %v2641 = vsub.s32 0, %v2640
    %v2642 = vrot.slane %v2633, %v2641
    %v2643 = vlaneseq
    %v2644 = vshrl.u32 %v2643, 7
    %v2645 = vsub.s32 1, %v2644
    %v2646 = vrot.slane %v2633, %v2645
    %v2649 = vadd.f32 %v2624, %v2642
    %v2650 = vadd.f32 %v2626, %v2646
    %v2651 = vadd.f32 %v2628, %v2642
    %v2652 = vadd.f32 %v2630, %v2646
    %v2653 = vadd.f32 %v2649, %v2650
    %2654 = vadd.xlane.f32.xlu0 %v2653
    %v2655 = vpop.xlane.xlu0 %2654
    %v2656 = vadd.f32 %v2651, %v2652
    %2657 = vadd.xlane.f32.xlu0 %v2656
    %v2658 = vpop.xlane.xlu0 %2657
    %v2659 = vmul.f32 %v2655, %v1324
    %v2660 = vmul.f32 %v2658, %v1324
    %v2661 = vmul.f32 %v2649, %v2649
    %v2662 = vmul.f32 %v2650, %v2650
    %v2663 = vmul.f32 %v2651, %v2651
    %v2664 = vmul.f32 %v2652, %v2652
    %v2665 = vadd.f32 %v2661, %v2662
    %2666 = vadd.xlane.f32.xlu0 %v2665
    %v2667 = vpop.xlane.xlu0 %2666
    %v2668 = vadd.f32 %v2663, %v2664
    %2669 = vadd.xlane.f32.xlu0 %v2668
    %v2670 = vpop.xlane.xlu0 %2669
    %v2671 = vmul.f32 %v2667, %v1324
    %v2672 = vmul.f32 %v2670, %v1324
    %v2673 = vmul.f32 %v2659, %v2659
    %v2674 = vmul.f32 %v2660, %v2660
    %v2675 = vsub.f32 %v2671, %v2673
    %v2676 = vsub.f32 %v2672, %v2674
    %v2677 = vmax.f32 %v2675, 0.0
    %v2678 = vmax.f32 %v2676, 0.0
    %v2679 = vsub.f32 %v2649, %v2659
    %v2680 = vsub.f32 %v2650, %v2659
    %v2681 = vsub.f32 %v2651, %v2660
    %v2682 = vsub.f32 %v2652, %v2660
    %v2683 = vadd.f32 %v2677, 1e-05
    %v2684 = vadd.f32 %v2678, 1e-05
    %v2685 = vrsqrt.pop %v2683
    %v2686 = vrsqrt.pop %v2684
    %v2687 = vmul.f32 %v2679, %v2685
    %v2688 = vmul.f32 %v2680, %v2685
    %v2689 = vmul.f32 %v2681, %v2686
    %v2690 = vmul.f32 %v2682, %v2686
    %v2692 = vlaneseq
    %v2693 = vshrl.u32 %v2692, 7
    %v2694 = vsub.s32 0, %v2693
    %v2695 = vrot.slane %v2635, %v2694
    %v2696 = vlaneseq
    %v2697 = vshrl.u32 %v2696, 7
    %v2698 = vsub.s32 1, %v2697
    %v2699 = vrot.slane %v2635, %v2698
    %v2702 = vmul.f32 %v2687, %v2695
    %v2703 = vmul.f32 %v2688, %v2699
    %v2704 = vmul.f32 %v2689, %v2695
    %v2705 = vmul.f32 %v2690, %v2699
    %v2707 = vlaneseq
    %v2708 = vshrl.u32 %v2707, 7
    %v2709 = vsub.s32 0, %v2708
    %v2710 = vrot.slane %v2637, %v2709
    %v2711 = vlaneseq
    %v2712 = vshrl.u32 %v2711, 7
    %v2713 = vsub.s32 1, %v2712
    %v2714 = vrot.slane %v2637, %v2713
    %v2717 = vadd.f32 %v2702, %v2710
    %v2718 = vadd.f32 %v2703, %v2714
    %v2719 = vadd.f32 %v2704, %v2710
    %v2720 = vadd.f32 %v2705, %v2714
    %v2721 = vmax.f32 %v2717, 0.0
    %v2722 = vmax.f32 %v2718, 0.0
    %v2723 = vmax.f32 %v2719, 0.0
    %v2724 = vmax.f32 %v2720, 0.0
    %2725 = vst [vmem:[#allocation10] sm:$0xff] %v2721
    %2726 = vst [vmem:[#allocation10 + $0x8] sm:$0xff] %v2722
    %2727 = vst [vmem:[#allocation10 + $0x10] sm:$0xff] %v2723
    %2728 = vst [vmem:[#allocation10 + $0x18] sm:$0xff] %v2724
    // Predicated region
    $region34: #{tpu_custom_call.1} parent=1 // pred_check
      _
    $region35: #{tpu_custom_call.1} parent=1 // pred_check_branch
      %2730 = sbr.rel (0) target = $region37
    $region36: #{tpu_custom_call.1} parent=1 // pred_region
      %s2732 = ssub.s32 512, 512
      %2733 = vsyncadd [#allocation4], %s2732
      %s2734 = sshll.u32 [#allocation10], 4
      %s2735 = int_to_ptr.vmem [resolvable:$true] %s2734
      %2740 = dma.vmem_to_hbm [thread:$0]  %s2735, 512, %s4, [#allocation4], 256, 256, 16
    $region37: #{tpu_custom_call.1} parent=1 // pred_fallthru
      _
    // Predicated region
    $region38: #{tpu_custom_call.1} parent=1 // pred_check
      _
    $region39: #{tpu_custom_call.1} parent=1 // pred_check_branch
      %2742 = sbr.rel (0) target = $region41
    $region40: #{tpu_custom_call.1} parent=1 // pred_region
      %2743 = dma.done [#allocation4], 512
    $region41: #{tpu_custom_call.1} parent=1 // pred_fallthru
      _
    %2744 = vsyncpa [#allocation3], 1
    %2745 = vsyncpa [#allocation6], 1
    %2746 = vsyncpa [#allocation9], 1
    %2747 = vsyncpa [#allocation4], 1

</llo_original>
